<compile_context>
chip_gen: v6e
topology: v6e:2x2x1
jax: 0.10.0
libtpu: 0.0.40
codegen_flags: <defaults>
</compile_context>

<pallas_src>
import functools
import math

import jax
import jax.numpy as jnp
from jax.experimental import pallas as pl
from jax.experimental.pallas import tpu as pltpu


def encoder_layer_kernel(
    x_ref, q_ref, k_ref, v_ref,
    wo_ref, bo_ref,
    g1_ref, be1_ref,
    w1_ref, b1_ref, w2_ref, b2_ref,
    g2_ref, be2_ref,
    out_ref, attn_ref,
    *, n_heads, eps=1e-5,
):
    f32 = jnp.float32
    bf16 = jnp.bfloat16

    x = x_ref[...]                       # (tq, D) f32  query-tile rows (residual path)
    qh = q_ref[...]                      # (H, tq, dh) bf16, 1/sqrt(dh) pre-folded
    kh = k_ref[...]                      # (H, L,  dh) bf16, resident across q tiles
    vh = v_ref[...]                      # (H, L,  dh) bf16, resident across q tiles

    # ---- attention scores + softmax (f32 math) -----------------------------
    s = jnp.einsum("hqc,hkc->hqk", qh, kh,
                   preferred_element_type=f32)            # (H, tq, L)
    m = jnp.max(s, axis=-1, keepdims=True)
    e = jnp.exp(s - m)
    a = e * pl.reciprocal(jnp.sum(e, axis=-1, keepdims=True), approx=True)
    attn_ref[...] = a.astype(attn_ref.dtype)              # bf16 writeback by default

    # ---- context + merged-head output projection ----------------------------
    ctx = jnp.einsum("hqk,hkc->hqc", a.astype(bf16), vh,
                     preferred_element_type=f32)           # (H, tq, dh)
    ctx_m = jnp.concatenate(
        [ctx[h].astype(bf16) for h in range(n_heads)], axis=-1)   # (tq, D)
    new_x = jnp.dot(ctx_m, wo_ref[...],
                    preferred_element_type=f32) + bo_ref[...]      # (tq, D)

    # ---- residual + norm1 (dropout == identity in eval) --------------------
    xr = x + new_x
    mu = jnp.mean(xr, axis=-1, keepdims=True)
    var = jnp.mean(jnp.square(xr - mu), axis=-1, keepdims=True)
    xn = (xr - mu) * jax.lax.rsqrt(var + eps) * g1_ref[...] + be1_ref[...]

    # ---- pointwise conv1 -> relu -> conv2 (kernel_size=1 == matmul) ---------
    y = jnp.dot(xn.astype(bf16), w1_ref[...],
                preferred_element_type=f32) + b1_ref[...]
    y = jnp.maximum(y, 0.0)
    y = jnp.dot(y.astype(bf16), w2_ref[...],
                preferred_element_type=f32) + b2_ref[...]

    # ---- residual + norm2 ---------------------------------------------------
    z = xn + y
    mu2 = jnp.mean(z, axis=-1, keepdims=True)
    var2 = jnp.mean(jnp.square(z - mu2), axis=-1, keepdims=True)
    out_ref[...] = ((z - mu2) * jax.lax.rsqrt(var2 + eps) * g2_ref[...]
                    + be2_ref[...]).astype(out_ref.dtype)


def _pick_tq_and_vmem(L, D, n_heads, d_ff, attn_bytes):
    """Generation-aware query-tile size + vmem limit from the real VMEM capacity."""
    dh = D // n_heads
    try:
        cap = int(pltpu.get_tpu_info().vmem_capacity_bytes)
    except Exception:
        cap = 128 * 1024 * 1024
    vmem_limit = int(cap * 0.875)          # leave headroom for compiler scratch/sems
    budget = int(vmem_limit * 0.75)

    dh_pad = max(dh, 128)                   # lane padding of head-minor blocks
    l_pad = -(-L // 8) * 8
    l_lane = max(L, 128)
    d_lane = max(D, 128)
    dff_lane = max(d_ff, 128)

    def step_bytes(tq):
        tq_pad = -(-tq // 8) * 8
        attn_blk = 2 * n_heads * tq_pad * l_lane * attn_bytes     # dbl-buffered attn out block
        soft_tmp = 2 * n_heads * tq_pad * l_lane * 4              # f32 score/exp temporaries
        kv_res = 2 * 2 * n_heads * l_pad * dh_pad * 2             # K and V resident (dbl-buffered)
        q_blk = 2 * n_heads * tq_pad * dh_pad * 2
        x_blk = 2 * 2 * tq_pad * d_lane * 4                       # x in + out blocks
        w_res = 2 * (D * d_lane * 2 + 2 * D * dff_lane * 2
                     + 8 * d_lane * 4 + 2 * dff_lane * 4)         # wo/w1/w2 + biases/gains
        ffn_tmp = tq_pad * dff_lane * 4
        return attn_blk + soft_tmp + kv_res + q_blk + x_blk + w_res + ffn_tmp

    divisors = [d for d in range(1, L + 1) if L % d == 0]
    cands = sorted({d for d in divisors if (d % 8 == 0 or d == L) and d <= 512},
                   reverse=True)
    if not cands:
        cands = [L]
    tq = None
    for c in cands:
        if step_bytes(c) <= budget:
            tq = c
            break
    if tq is None:
        tq = min(cands)                     # smallest aligned divisor; may still be tight
    return tq, vmem_limit


def encoder_layer(x, params, *, n_heads, tq=None, attn_dtype=jnp.bfloat16):
    B, L, D = x.shape
    assert D % n_heads == 0
    dh = D // n_heads
    d_ff = params["w1"].shape[1]
    bf16 = jnp.bfloat16
    scale = 1.0 / math.sqrt(dh)

    auto_tq, vmem_limit = _pick_tq_and_vmem(L, D, n_heads, d_ff,
                                            jnp.dtype(attn_dtype).itemsize)
    if tq is None:
        tq = auto_tq
    assert L % tq == 0
    nt = L // tq

    # ---- Q/K/V projections hoisted to XLA: full-width (B*L, D) @ (D, D),
    #      computed once (not per query tile), then head-major bf16 layout.
    def heads(t):                          # (B, L, D) -> (B, H, L, dh) bf16
        return jnp.transpose(t.reshape(B, L, n_heads, dh), (0, 2, 1, 3)).astype(bf16)

    qh = heads((x @ params["wq"] + params["bq"]) * scale)   # fold 1/sqrt(dh) into q
    kh = heads(x @ params["wk"] + params["bk"])
    vh = heads(x @ params["wv"] + params["bv"])

    wo = params["wo"].astype(bf16)          # lane-dense (D, D); biases stay f32
    w1 = params["w1"].astype(bf16)
    w2 = params["w2"].astype(bf16)

    def full(shape):                        # resident operand: same block every step
        nd = len(shape)
        return pl.BlockSpec(shape, lambda b, q, _nd=nd: (0,) * _nd)

    in_specs = [
        pl.BlockSpec((None, tq, D), lambda b, q: (b, q, 0)),              # x query tile (f32)
        pl.BlockSpec((None, n_heads, tq, dh), lambda b, q: (b, 0, q, 0)),  # qh tile
        pl.BlockSpec((None, n_heads, L, dh), lambda b, q: (b, 0, 0, 0)),   # kh resident
        pl.BlockSpec((None, n_heads, L, dh), lambda b, q: (b, 0, 0, 0)),   # vh resident
        full((D, D)), full((1, D)),                                        # wo, bo
        full((1, D)), full((1, D)),                                        # norm1 gamma, beta
        full((D, d_ff)), full((1, d_ff)),                                  # conv1 w, b
        full((d_ff, D)), full((1, D)),                                     # conv2 w, b
        full((1, D)), full((1, D)),                                        # norm2 gamma, beta
    ]
    out_specs = [
        pl.BlockSpec((None, tq, D), lambda b, q: (b, q, 0)),
        pl.BlockSpec((None, n_heads, tq, L), lambda b, q: (b, 0, q, 0)),
    ]
    out_shape = [
        jax.ShapeDtypeStruct((B, L, D), jnp.float32),
        jax.ShapeDtypeStruct((B, n_heads, L, L), attn_dtype),
    ]

    kernel = functools.partial(encoder_layer_kernel, n_heads=n_heads)
    return pl.pallas_call(
        kernel,
        out_shape=out_shape,
        grid_spec=pltpu.PrefetchScalarGridSpec(
            num_scalar_prefetch=0,
            grid=(B, nt),
            in_specs=in_specs,
            out_specs=out_specs,
        ),
        compiler_params=pltpu.CompilerParams(
            dimension_semantics=("parallel", "parallel"),
            vmem_limit_bytes=vmem_limit,
        ),
    )(
        x, qh, kh, vh,
        wo, params["bo"],
        params["g1"], params["be1"],
        w1, params["b1"], w2, params["b2"],
        params["g2"], params["be2"],
    )


def encoder_layer_ref(x, p, *, n_heads):
    """Pure-JAX f32 reference (mirrors the PyTorch forward in eval mode)."""
    B, L, D = x.shape
    dh = D // n_heads
    q = x @ p["wq"] + p["bq"][0]
    k = x @ p["wk"] + p["bk"][0]
    v = x @ p["wv"] + p["bv"][0]
    qh = q.reshape(B, L, n_heads, dh)
    kh = k.reshape(B, L, n_heads, dh)
    vh = v.reshape(B, L, n_heads, dh)
    s = jnp.einsum("blhd,bmhd->bhlm", qh, kh) / jnp.sqrt(jnp.float32(dh))
    a = jax.nn.softmax(s, axis=-1)
    ctx = jnp.einsum("bhlm,bmhd->blhd", a, vh).reshape(B, L, D)
    new_x = ctx @ p["wo"] + p["bo"][0]

    def ln(t, g, b, eps=1e-5):
        mu = t.mean(-1, keepdims=True)
        var = ((t - mu) ** 2).mean(-1, keepdims=True)
        return (t - mu) / jnp.sqrt(var + eps) * g[0] + b[0]

    xn = ln(x + new_x, p["g1"], p["be1"])
    y = jnp.maximum(xn @ p["w1"] + p["b1"][0], 0.0)
    y = y @ p["w2"] + p["b2"][0]
    return ln(xn + y, p["g2"], p["be2"]), a


if __name__ == "__main__":
    B, L, d_model, n_heads = 2, 8, 32, 4
    d_ff = 4 * d_model

    key = jax.random.PRNGKey(0)
    keys = jax.random.split(key, 12)
    s = 0.05
    params = {
        "wq": s * jax.random.normal(keys[0], (d_model, d_model), jnp.float32),
        "bq": s * jax.random.normal(keys[1], (1, d_model), jnp.float32),
        "wk": s * jax.random.normal(keys[2], (d_model, d_model), jnp.float32),
        "bk": s * jax.random.normal(keys[3], (1, d_model), jnp.float32),
        "wv": s * jax.random.normal(keys[4], (d_model, d_model), jnp.float32),
        "bv": s * jax.random.normal(keys[5], (1, d_model), jnp.float32),
        "wo": s * jax.random.normal(keys[6], (d_model, d_model), jnp.float32),
        "bo": s * jax.random.normal(keys[7], (1, d_model), jnp.float32),
        "g1": jnp.ones((1, d_model), jnp.float32),
        "be1": jnp.zeros((1, d_model), jnp.float32),
        "w1": s * jax.random.normal(keys[8], (d_model, d_ff), jnp.float32),
        "b1": s * jax.random.normal(keys[9], (1, d_ff), jnp.float32),
        "w2": s * jax.random.normal(keys[10], (d_ff, d_model), jnp.float32),
        "b2": s * jax.random.normal(keys[11], (1, d_model), jnp.float32),
        "g2": jnp.ones((1, d_model), jnp.float32),
        "be2": jnp.zeros((1, d_model), jnp.float32),
    }

    x = jax.random.normal(jax.random.PRNGKey(42), (B, L, d_model), jnp.float32)

    out, attn = encoder_layer(x, params, n_heads=n_heads)
    out = jax.block_until_ready(out)
    attn = jax.block_until_ready(attn)

    out_ref, attn_ref = encoder_layer_ref(x, params, n_heads=n_heads)
    assert out.shape == (B, L, d_model) and attn.shape == (B, n_heads, L, L)
    # bf16 MXU operands + bf16 attn writeback -> ~1e-2-level tolerance vs f32 ref.
    assert jnp.allclose(out, out_ref, atol=2e-2, rtol=2e-2)
    assert jnp.allclose(attn.astype(jnp.float32), attn_ref, atol=2e-2, rtol=2e-2)

    print("KERNEL_OK")
</pallas_src>

<mosaic_0001>
module attributes {stable_mosaic.version = 11 : i64} {
  func.func @encoder_layer_kernel(%arg0: i32, %arg1: i32, %arg2: memref<1x8x32xf32, #tpu.memory_space<vmem>>, %arg3: memref<1x4x8x8xbf16, #tpu.memory_space<vmem>>, %arg4: memref<1x4x8x8xbf16, #tpu.memory_space<vmem>>, %arg5: memref<1x4x8x8xbf16, #tpu.memory_space<vmem>>, %arg6: memref<32x32xbf16, #tpu.memory_space<vmem>>, %arg7: memref<1x32xf32, #tpu.memory_space<vmem>>, %arg8: memref<1x32xf32, #tpu.memory_space<vmem>>, %arg9: memref<1x32xf32, #tpu.memory_space<vmem>>, %arg10: memref<32x128xbf16, #tpu.memory_space<vmem>>, %arg11: memref<1x128xf32, #tpu.memory_space<vmem>>, %arg12: memref<128x32xbf16, #tpu.memory_space<vmem>>, %arg13: memref<1x32xf32, #tpu.memory_space<vmem>>, %arg14: memref<1x32xf32, #tpu.memory_space<vmem>>, %arg15: memref<1x32xf32, #tpu.memory_space<vmem>>, %arg16: memref<1x8x32xf32, #tpu.memory_space<vmem>>, %arg17: memref<1x4x8x8xbf16, #tpu.memory_space<vmem>>) attributes {dimension_semantics = [#tpu.dimension_semantics<parallel>, #tpu.dimension_semantics<parallel>], iteration_bounds = array<i64: 2, 1>, scalar_prefetch = 0 : i64, scratch_operands = 0 : i64, tpu.core_type = #tpu.core_type<tc>, window_params = [{transform_indices = @transform_0, window_bounds = array<i64: 1, 8, 32>}, {transform_indices = @transform_1, window_bounds = array<i64: 1, 4, 8, 8>}, {transform_indices = @transform_2, window_bounds = array<i64: 1, 4, 8, 8>}, {transform_indices = @transform_3, window_bounds = array<i64: 1, 4, 8, 8>}, {pipeline_mode = #tpu.pipeline_mode<synchronous>, transform_indices = @transform_4, window_bounds = array<i64: 32, 32>}, {pipeline_mode = #tpu.pipeline_mode<synchronous>, transform_indices = @transform_5, window_bounds = array<i64: 1, 32>}, {pipeline_mode = #tpu.pipeline_mode<synchronous>, transform_indices = @transform_6, window_bounds = array<i64: 1, 32>}, {pipeline_mode = #tpu.pipeline_mode<synchronous>, transform_indices = @transform_7, window_bounds = array<i64: 1, 32>}, {pipeline_mode = #tpu.pipeline_mode<synchronous>, transform_indices = @transform_8, window_bounds = array<i64: 32, 128>}, {pipeline_mode = #tpu.pipeline_mode<synchronous>, transform_indices = @transform_9, window_bounds = array<i64: 1, 128>}, {pipeline_mode = #tpu.pipeline_mode<synchronous>, transform_indices = @transform_10, window_bounds = array<i64: 128, 32>}, {pipeline_mode = #tpu.pipeline_mode<synchronous>, transform_indices = @transform_11, window_bounds = array<i64: 1, 32>}, {pipeline_mode = #tpu.pipeline_mode<synchronous>, transform_indices = @transform_12, window_bounds = array<i64: 1, 32>}, {pipeline_mode = #tpu.pipeline_mode<synchronous>, transform_indices = @transform_13, window_bounds = array<i64: 1, 32>}, {transform_indices = @transform_14, window_bounds = array<i64: 1, 8, 32>}, {transform_indices = @transform_15, window_bounds = array<i64: 1, 4, 8, 8>}]} {
    %c0 = arith.constant 0 : index
    %c0_0 = arith.constant 0 : index
    %c0_1 = arith.constant 0 : index
    %0 = vector.load %arg2[%c0, %c0_0, %c0_1] : memref<1x8x32xf32, #tpu.memory_space<vmem>>, vector<1x8x32xf32>
    %1 = vector.shape_cast %0 : vector<1x8x32xf32> to vector<8x32xf32>
    %c0_2 = arith.constant 0 : index
    %c0_3 = arith.constant 0 : index
    %c0_4 = arith.constant 0 : index
    %c0_5 = arith.constant 0 : index
    %2 = vector.load %arg3[%c0_2, %c0_3, %c0_4, %c0_5] : memref<1x4x8x8xbf16, #tpu.memory_space<vmem>>, vector<1x4x8x8xbf16>
    %3 = vector.shape_cast %2 : vector<1x4x8x8xbf16> to vector<4x8x8xbf16>
    %c0_6 = arith.constant 0 : index
    %c0_7 = arith.constant 0 : index
    %c0_8 = arith.constant 0 : index
    %c0_9 = arith.constant 0 : index
    %4 = vector.load %arg4[%c0_6, %c0_7, %c0_8, %c0_9] : memref<1x4x8x8xbf16, #tpu.memory_space<vmem>>, vector<1x4x8x8xbf16>
    %5 = vector.shape_cast %4 : vector<1x4x8x8xbf16> to vector<4x8x8xbf16>
    %c0_10 = arith.constant 0 : index
    %c0_11 = arith.constant 0 : index
    %c0_12 = arith.constant 0 : index
    %c0_13 = arith.constant 0 : index
    %6 = vector.load %arg5[%c0_10, %c0_11, %c0_12, %c0_13] : memref<1x4x8x8xbf16, #tpu.memory_space<vmem>>, vector<1x4x8x8xbf16>
    %7 = vector.shape_cast %6 : vector<1x4x8x8xbf16> to vector<4x8x8xbf16>
    "tpu.trace_start"() <{level = 10 : i32, message = "hqc,hkc->hqk"}> : () -> ()
    %cst = arith.constant dense<0.000000e+00> : vector<4x8x8xf32>
    %8 = tpu.matmul %3, %5, %cst {dimension_numbers = #tpu.dot_dimension_numbers<[2], [2], [1], [1], [0, 0, 0, 1, 1, 1], [0], [0]>} : vector<4x8x8xbf16>, vector<4x8x8xbf16>, vector<4x8x8xf32> -> vector<4x8x8xf32>
    "tpu.trace_stop"() : () -> ()
    %cst_14 = arith.constant dense<0xFF800000> : vector<4x8xf32>
    %9 = vector.multi_reduction <maximumf>, %8, %cst_14 [2] : vector<4x8x8xf32> to vector<4x8xf32>
    %10 = vector.shape_cast %9 : vector<4x8xf32> to vector<4x8x1xf32>
    %11 = vector.broadcast %10 : vector<4x8x1xf32> to vector<4x8x8xf32>
    %12 = arith.subf %8, %11 : vector<4x8x8xf32>
    %13 = math.exp %12 : vector<4x8x8xf32>
    %cst_15 = arith.constant dense<0.000000e+00> : vector<4x8xf32>
    %14 = vector.multi_reduction <add>, %13, %cst_15 [2] : vector<4x8x8xf32> to vector<4x8xf32>
    %15 = vector.shape_cast %14 : vector<4x8xf32> to vector<4x8x1xf32>
    %16 = tpu.reciprocal %15 {approx = true} : vector<4x8x1xf32> -> vector<4x8x1xf32>
    %17 = vector.broadcast %16 : vector<4x8x1xf32> to vector<4x8x8xf32>
    %18 = arith.mulf %13, %17 : vector<4x8x8xf32>
    %19 = arith.truncf %18 : vector<4x8x8xf32> to vector<4x8x8xbf16>
    %c0_16 = arith.constant 0 : index
    %c0_17 = arith.constant 0 : index
    %c0_18 = arith.constant 0 : index
    %c0_19 = arith.constant 0 : index
    %20 = vector.load %arg17[%c0_16, %c0_17, %c0_18, %c0_19] : memref<1x4x8x8xbf16, #tpu.memory_space<vmem>>, vector<1x4x8x8xbf16>
    %21 = vector.shape_cast %20 : vector<1x4x8x8xbf16> to vector<4x8x8xbf16>
    %22 = vector.shape_cast %19 : vector<4x8x8xbf16> to vector<1x4x8x8xbf16>
    tpu.vector_store %arg17[%c0_16, %c0_17, %c0_18, %c0_19], %22 {strides = array<i32>} : memref<1x4x8x8xbf16, #tpu.memory_space<vmem>>, vector<1x4x8x8xbf16>,
    %23 = arith.truncf %18 : vector<4x8x8xf32> to vector<4x8x8xbf16>
    "tpu.trace_start"() <{level = 10 : i32, message = "hqk,hkc->hqc"}> : () -> ()
    %cst_20 = arith.constant dense<0.000000e+00> : vector<4x8x8xf32>
    %24 = tpu.matmul %23, %7, %cst_20 {dimension_numbers = #tpu.dot_dimension_numbers<[2], [1], [1], [2], [0, 0, 0, 1, 1, 2], [0], [0]>} : vector<4x8x8xbf16>, vector<4x8x8xbf16>, vector<4x8x8xf32> -> vector<4x8x8xf32>
    "tpu.trace_stop"() : () -> ()
    %25 = vector.extract_strided_slice %24 {offsets = [0, 0, 0], sizes = [1, 8, 8], strides = [1, 1, 1]} : vector<4x8x8xf32> to vector<1x8x8xf32>
    %26 = vector.shape_cast %25 : vector<1x8x8xf32> to vector<8x8xf32>
    %27 = arith.truncf %26 : vector<8x8xf32> to vector<8x8xbf16>
    %28 = vector.extract_strided_slice %24 {offsets = [1, 0, 0], sizes = [1, 8, 8], strides = [1, 1, 1]} : vector<4x8x8xf32> to vector<1x8x8xf32>
    %29 = vector.shape_cast %28 : vector<1x8x8xf32> to vector<8x8xf32>
    %30 = arith.truncf %29 : vector<8x8xf32> to vector<8x8xbf16>
    %31 = vector.extract_strided_slice %24 {offsets = [2, 0, 0], sizes = [1, 8, 8], strides = [1, 1, 1]} : vector<4x8x8xf32> to vector<1x8x8xf32>
    %32 = vector.shape_cast %31 : vector<1x8x8xf32> to vector<8x8xf32>
    %33 = arith.truncf %32 : vector<8x8xf32> to vector<8x8xbf16>
    %34 = vector.extract_strided_slice %24 {offsets = [3, 0, 0], sizes = [1, 8, 8], strides = [1, 1, 1]} : vector<4x8x8xf32> to vector<1x8x8xf32>
    %35 = vector.shape_cast %34 : vector<1x8x8xf32> to vector<8x8xf32>
    %36 = arith.truncf %35 : vector<8x8xf32> to vector<8x8xbf16>
    %37 = tpu.concatenate %27, %30, %33, %36 in 1 : vector<8x8xbf16>, vector<8x8xbf16>, vector<8x8xbf16>, vector<8x8xbf16> -> vector<8x32xbf16>
    %c0_21 = arith.constant 0 : index
    %c0_22 = arith.constant 0 : index
    %38 = vector.load %arg6[%c0_21, %c0_22] : memref<32x32xbf16, #tpu.memory_space<vmem>>, vector<32x32xbf16>
    %cst_23 = arith.constant dense<0.000000e+00> : vector<8x32xf32>
    %39 = tpu.matmul %37, %38, %cst_23 {dimension_numbers = #tpu.dot_dimension_numbers<[1], [0], [0], [1], [0, 0, 1, 1], [], []>} : vector<8x32xbf16>, vector<32x32xbf16>, vector<8x32xf32> -> vector<8x32xf32>
    %c0_24 = arith.constant 0 : index
    %c0_25 = arith.constant 0 : index
    %40 = vector.load %arg7[%c0_24, %c0_25] : memref<1x32xf32, #tpu.memory_space<vmem>>, vector<1x32xf32>
    %41 = vector.broadcast %40 : vector<1x32xf32> to vector<8x32xf32>
    %42 = arith.addf %39, %41 : vector<8x32xf32>
    %43 = arith.addf %1, %42 : vector<8x32xf32>
    %cst_26 = arith.constant dense<0.000000e+00> : vector<8xf32>
    %44 = vector.multi_reduction <add>, %43, %cst_26 [1] : vector<8x32xf32> to vector<8xf32>
    %45 = vector.shape_cast %44 : vector<8xf32> to vector<8x1xf32>
    %cst_27 = arith.constant 3.200000e+01 : f32
    %46 = vector.broadcast %cst_27 : f32 to vector<8x1xf32>
    %47 = arith.divf %45, %46 : vector<8x1xf32>
    %48 = vector.broadcast %47 : vector<8x1xf32> to vector<8x32xf32>
    %49 = arith.subf %43, %48 : vector<8x32xf32>
    %50 = arith.mulf %49, %49 : vector<8x32xf32>
    %cst_28 = arith.constant dense<0.000000e+00> : vector<8xf32>
    %51 = vector.multi_reduction <add>, %50, %cst_28 [1] : vector<8x32xf32> to vector<8xf32>
    %52 = vector.shape_cast %51 : vector<8xf32> to vector<8x1xf32>
    %cst_29 = arith.constant 3.200000e+01 : f32
    %53 = vector.broadcast %cst_29 : f32 to vector<8x1xf32>
    %54 = arith.divf %52, %53 : vector<8x1xf32>
    %55 = vector.broadcast %47 : vector<8x1xf32> to vector<8x32xf32>
    %56 = arith.subf %43, %55 : vector<8x32xf32>
    %cst_30 = arith.constant 9.99999974E-6 : f32
    %57 = vector.broadcast %cst_30 : f32 to vector<8x1xf32>
    %58 = arith.addf %54, %57 : vector<8x1xf32>
    %59 = math.rsqrt %58 : vector<8x1xf32>
    %60 = vector.broadcast %59 : vector<8x1xf32> to vector<8x32xf32>
    %61 = arith.mulf %56, %60 : vector<8x32xf32>
    %c0_31 = arith.constant 0 : index
    %c0_32 = arith.constant 0 : index
    %62 = vector.load %arg8[%c0_31, %c0_32] : memref<1x32xf32, #tpu.memory_space<vmem>>, vector<1x32xf32>
    %63 = vector.broadcast %62 : vector<1x32xf32> to vector<8x32xf32>
    %64 = arith.mulf %61, %63 : vector<8x32xf32>
    %c0_33 = arith.constant 0 : index
    %c0_34 = arith.constant 0 : index
    %65 = vector.load %arg9[%c0_33, %c0_34] : memref<1x32xf32, #tpu.memory_space<vmem>>, vector<1x32xf32>
    %66 = vector.broadcast %65 : vector<1x32xf32> to vector<8x32xf32>
    %67 = arith.addf %64, %66 : vector<8x32xf32>
    %68 = arith.truncf %67 : vector<8x32xf32> to vector<8x32xbf16>
    %c0_35 = arith.constant 0 : index
    %c0_36 = arith.constant 0 : index
    %69 = vector.load %arg10[%c0_35, %c0_36] : memref<32x128xbf16, #tpu.memory_space<vmem>>, vector<32x128xbf16>
    %cst_37 = arith.constant dense<0.000000e+00> : vector<8x128xf32>
    %70 = tpu.matmul %68, %69, %cst_37 {dimension_numbers = #tpu.dot_dimension_numbers<[1], [0], [0], [1], [0, 0, 1, 1], [], []>} : vector<8x32xbf16>, vector<32x128xbf16>, vector<8x128xf32> -> vector<8x128xf32>
    %c0_38 = arith.constant 0 : index
    %c0_39 = arith.constant 0 : index
    %71 = vector.load %arg11[%c0_38, %c0_39] : memref<1x128xf32, #tpu.memory_space<vmem>>, vector<1x128xf32>
    %72 = vector.broadcast %71 : vector<1x128xf32> to vector<8x128xf32>
    %73 = arith.addf %70, %72 : vector<8x128xf32>
    %cst_40 = arith.constant 0.000000e+00 : f32
    %74 = vector.broadcast %cst_40 : f32 to vector<8x128xf32>
    %75 = arith.maximumf %73, %74 : vector<8x128xf32>
    %76 = arith.truncf %75 : vector<8x128xf32> to vector<8x128xbf16>
    %c0_41 = arith.constant 0 : index
    %c0_42 = arith.constant 0 : index
    %77 = vector.load %arg12[%c0_41, %c0_42] : memref<128x32xbf16, #tpu.memory_space<vmem>>, vector<128x32xbf16>
    %cst_43 = arith.constant dense<0.000000e+00> : vector<8x32xf32>
    %78 = tpu.matmul %76, %77, %cst_43 {dimension_numbers = #tpu.dot_dimension_numbers<[1], [0], [0], [1], [0, 0, 1, 1], [], []>} : vector<8x128xbf16>, vector<128x32xbf16>, vector<8x32xf32> -> vector<8x32xf32>
    %c0_44 = arith.constant 0 : index
    %c0_45 = arith.constant 0 : index
    %79 = vector.load %arg13[%c0_44, %c0_45] : memref<1x32xf32, #tpu.memory_space<vmem>>, vector<1x32xf32>
    %80 = vector.broadcast %79 : vector<1x32xf32> to vector<8x32xf32>
    %81 = arith.addf %78, %80 : vector<8x32xf32>
    %82 = arith.addf %67, %81 : vector<8x32xf32>
    %cst_46 = arith.constant dense<0.000000e+00> : vector<8xf32>
    %83 = vector.multi_reduction <add>, %82, %cst_46 [1] : vector<8x32xf32> to vector<8xf32>
    %84 = vector.shape_cast %83 : vector<8xf32> to vector<8x1xf32>
    %cst_47 = arith.constant 3.200000e+01 : f32
    %85 = vector.broadcast %cst_47 : f32 to vector<8x1xf32>
    %86 = arith.divf %84, %85 : vector<8x1xf32>
    %87 = vector.broadcast %86 : vector<8x1xf32> to vector<8x32xf32>
    %88 = arith.subf %82, %87 : vector<8x32xf32>
    %89 = arith.mulf %88, %88 : vector<8x32xf32>
    %cst_48 = arith.constant dense<0.000000e+00> : vector<8xf32>
    %90 = vector.multi_reduction <add>, %89, %cst_48 [1] : vector<8x32xf32> to vector<8xf32>
    %91 = vector.shape_cast %90 : vector<8xf32> to vector<8x1xf32>
    %cst_49 = arith.constant 3.200000e+01 : f32
    %92 = vector.broadcast %cst_49 : f32 to vector<8x1xf32>
    %93 = arith.divf %91, %92 : vector<8x1xf32>
    %94 = vector.broadcast %86 : vector<8x1xf32> to vector<8x32xf32>
    %95 = arith.subf %82, %94 : vector<8x32xf32>
    %cst_50 = arith.constant 9.99999974E-6 : f32
    %96 = vector.broadcast %cst_50 : f32 to vector<8x1xf32>
    %97 = arith.addf %93, %96 : vector<8x1xf32>
    %98 = math.rsqrt %97 : vector<8x1xf32>
    %99 = vector.broadcast %98 : vector<8x1xf32> to vector<8x32xf32>
    %100 = arith.mulf %95, %99 : vector<8x32xf32>
    %c0_51 = arith.constant 0 : index
    %c0_52 = arith.constant 0 : index
    %101 = vector.load %arg14[%c0_51, %c0_52] : memref<1x32xf32, #tpu.memory_space<vmem>>, vector<1x32xf32>
    %102 = vector.broadcast %101 : vector<1x32xf32> to vector<8x32xf32>
    %103 = arith.mulf %100, %102 : vector<8x32xf32>
    %c0_53 = arith.constant 0 : index
    %c0_54 = arith.constant 0 : index
    %104 = vector.load %arg15[%c0_53, %c0_54] : memref<1x32xf32, #tpu.memory_space<vmem>>, vector<1x32xf32>
    %105 = vector.broadcast %104 : vector<1x32xf32> to vector<8x32xf32>
    %106 = arith.addf %103, %105 : vector<8x32xf32>
    %c0_55 = arith.constant 0 : index
    %c0_56 = arith.constant 0 : index
    %c0_57 = arith.constant 0 : index
    %107 = vector.load %arg16[%c0_55, %c0_56, %c0_57] : memref<1x8x32xf32, #tpu.memory_space<vmem>>, vector<1x8x32xf32>
    %108 = vector.shape_cast %107 : vector<1x8x32xf32> to vector<8x32xf32>
    %109 = vector.shape_cast %106 : vector<8x32xf32> to vector<1x8x32xf32>
    tpu.vector_store %arg16[%c0_55, %c0_56, %c0_57], %109 {strides = array<i32>} : memref<1x8x32xf32, #tpu.memory_space<vmem>>, vector<1x8x32xf32>,
    return
  }
  func.func @transform_0(%arg0: i32, %arg1: i32) -> (i32, i32, i32) {
    %c0_i32 = arith.constant 0 : i32
    %c0_i32_0 = arith.constant 0 : i32
    return %arg0, %arg1, %c0_i32 : i32, i32, i32
  }
  func.func @transform_1(%arg0: i32, %arg1: i32) -> (i32, i32, i32, i32) {
    %c0_i32 = arith.constant 0 : i32
    %c0_i32_0 = arith.constant 0 : i32
    %c0_i32_1 = arith.constant 0 : i32
    return %arg0, %c0_i32, %arg1, %c0_i32_0 : i32, i32, i32, i32
  }
  func.func @transform_2(%arg0: i32, %arg1: i32) -> (i32, i32, i32, i32) {
    %c0_i32 = arith.constant 0 : i32
    %c0_i32_0 = arith.constant 0 : i32
    %c0_i32_1 = arith.constant 0 : i32
    %c0_i32_2 = arith.constant 0 : i32
    return %arg0, %c0_i32, %c0_i32_0, %c0_i32_1 : i32, i32, i32, i32
  }
  func.func @transform_3(%arg0: i32, %arg1: i32) -> (i32, i32, i32, i32) {
    %c0_i32 = arith.constant 0 : i32
    %c0_i32_0 = arith.constant 0 : i32
    %c0_i32_1 = arith.constant 0 : i32
    %c0_i32_2 = arith.constant 0 : i32
    return %arg0, %c0_i32, %c0_i32_0, %c0_i32_1 : i32, i32, i32, i32
  }
  func.func @transform_4(%arg0: i32, %arg1: i32) -> (i32, i32) {
    %c0_i32 = arith.constant 0 : i32
    %c0_i32_0 = arith.constant 0 : i32
    %c0_i32_1 = arith.constant 0 : i32
    return %c0_i32, %c0_i32_0 : i32, i32
  }
  func.func @transform_5(%arg0: i32, %arg1: i32) -> (i32, i32) {
    %c0_i32 = arith.constant 0 : i32
    %c0_i32_0 = arith.constant 0 : i32
    %c0_i32_1 = arith.constant 0 : i32
    return %c0_i32, %c0_i32_0 : i32, i32
  }
  func.func @transform_6(%arg0: i32, %arg1: i32) -> (i32, i32) {
    %c0_i32 = arith.constant 0 : i32
    %c0_i32_0 = arith.constant 0 : i32
    %c0_i32_1 = arith.constant 0 : i32
    return %c0_i32, %c0_i32_0 : i32, i32
  }
  func.func @transform_7(%arg0: i32, %arg1: i32) -> (i32, i32) {
    %c0_i32 = arith.constant 0 : i32
    %c0_i32_0 = arith.constant 0 : i32
    %c0_i32_1 = arith.constant 0 : i32
    return %c0_i32, %c0_i32_0 : i32, i32
  }
  func.func @transform_8(%arg0: i32, %arg1: i32) -> (i32, i32) {
    %c0_i32 = arith.constant 0 : i32
    %c0_i32_0 = arith.constant 0 : i32
    %c0_i32_1 = arith.constant 0 : i32
    return %c0_i32, %c0_i32_0 : i32, i32
  }
  func.func @transform_9(%arg0: i32, %arg1: i32) -> (i32, i32) {
    %c0_i32 = arith.constant 0 : i32
    %c0_i32_0 = arith.constant 0 : i32
    %c0_i32_1 = arith.constant 0 : i32
    return %c0_i32, %c0_i32_0 : i32, i32
  }
  func.func @transform_10(%arg0: i32, %arg1: i32) -> (i32, i32) {
    %c0_i32 = arith.constant 0 : i32
    %c0_i32_0 = arith.constant 0 : i32
    %c0_i32_1 = arith.constant 0 : i32
    return %c0_i32, %c0_i32_0 : i32, i32
  }
  func.func @transform_11(%arg0: i32, %arg1: i32) -> (i32, i32) {
    %c0_i32 = arith.constant 0 : i32
    %c0_i32_0 = arith.constant 0 : i32
    %c0_i32_1 = arith.constant 0 : i32
    return %c0_i32, %c0_i32_0 : i32, i32
  }
  func.func @transform_12(%arg0: i32, %arg1: i32) -> (i32, i32) {
    %c0_i32 = arith.constant 0 : i32
    %c0_i32_0 = arith.constant 0 : i32
    %c0_i32_1 = arith.constant 0 : i32
    return %c0_i32, %c0_i32_0 : i32, i32
  }
  func.func @transform_13(%arg0: i32, %arg1: i32) -> (i32, i32) {
    %c0_i32 = arith.constant 0 : i32
    %c0_i32_0 = arith.constant 0 : i32
    %c0_i32_1 = arith.constant 0 : i32
    return %c0_i32, %c0_i32_0 : i32, i32
  }
  func.func @transform_14(%arg0: i32, %arg1: i32) -> (i32, i32, i32) {
    %c0_i32 = arith.constant 0 : i32
    %c0_i32_0 = arith.constant 0 : i32
    return %arg0, %arg1, %c0_i32 : i32, i32, i32
  }
  func.func @transform_15(%arg0: i32, %arg1: i32) -> (i32, i32, i32, i32) {
    %c0_i32 = arith.constant 0 : i32
    %c0_i32_0 = arith.constant 0 : i32
    %c0_i32_1 = arith.constant 0 : i32
    return %arg0, %c0_i32, %arg1, %c0_i32_0 : i32, i32, i32, i32
  }
}

</mosaic_0001>

<llo_original>
// kernel: tpu_custom_call.1
$region0: #{tpu_custom_call.1}
  #allocation0 [shape = 'u32[]', space=smem, size = 0x4, offset = 0x4, fixed_abs, tag = 'smem constant byte address 0x4 - core index']
  #allocation1 [shape = 'u32[144,128]{1,0:T(1,128)}', space=vmem, size = 0x12000, scoped, tag = 'internal scratch']
  %s0 = inlined_call_operand.vmem [shape: f32[2,8,32], index: 0, kind: input, shape index: {}]
  %s1 = inlined_call_operand.vmem [shape: bf16[2,4,8,8], index: 1, kind: input, shape index: {}]
  %s2 = inlined_call_operand.vmem [shape: bf16[2,4,8,8], index: 2, kind: input, shape index: {}]
  %s3 = inlined_call_operand.hbm [shape: bf16[2,4,8,8], index: 3, kind: input, shape index: {}]
  %s4 = inlined_call_operand.hbm [shape: bf16[32,32], index: 4, kind: input, shape index: {}]
  %s5 = inlined_call_operand.vmem [shape: f32[1,32], index: 5, kind: input, shape index: {}]
  %s6 = inlined_call_operand.vmem [shape: f32[1,32], index: 6, kind: input, shape index: {}]
  %s7 = inlined_call_operand.hbm [shape: f32[1,32], index: 7, kind: input, shape index: {}]
  %s8 = inlined_call_operand.hbm [shape: bf16[32,128], index: 8, kind: input, shape index: {}]
  %s9 = inlined_call_operand.hbm [shape: f32[1,128], index: 9, kind: input, shape index: {}]
  %s10 = inlined_call_operand.vmem [shape: bf16[128,32], index: 10, kind: input, shape index: {}]
  %s11 = inlined_call_operand.vmem [shape: f32[1,32], index: 11, kind: input, shape index: {}]
  %s12 = inlined_call_operand.vmem [shape: f32[1,32], index: 12, kind: input, shape index: {}]
  %s13 = inlined_call_operand.vmem [shape: f32[1,32], index: 13, kind: input, shape index: {}]
  %s14 = inlined_call_operand.hbm [shape: f32[2,8,32], index: 14, kind: output, shape index: {0}]
  %s15 = inlined_call_operand.hbm [shape: bf16[2,4,8,8], index: 15, kind: output, shape index: {1}]
  %16 = xla_tuple %s14, %s15
  %s17 = sld [smem:[#allocation0]]
  $region117: #{tpu_custom_call.1} parent=0
    _
  %s19 = ssub.s32 1, %s17
  %s20 = scalar_select 0, %s19, %s17
  $region1: #{tpu_custom_call.1} parent=0
    #allocation2 [shape = 'u8[16384]{0}', space=vmem, size = 0x4000, scoped, tag = 'input window, operand 3']
    #allocation3 [shape = 's32[2]{0}', space=sflag, size = 0x8, scoped, tag = 'scoped memory for tpu_custom_call.1']
    #allocation4 [shape = 's32[2]{0}', space=sflag, size = 0x8, scoped, tag = 'scoped memory for tpu_custom_call.1']
    #allocation5 [shape = 'u8[8192]{0}', space=vmem, size = 0x2000, scoped, tag = 'input window, operand 4, single buffered']
    #allocation6 [shape = 's32[1]{0}', space=sflag, size = 0x4, scoped, tag = 'scoped memory for tpu_custom_call.1']
    #allocation7 [shape = 'u8[512]{0}', space=vmem, size = 0x400, scoped, tag = 'input window, operand 7, single buffered']
    #allocation8 [shape = 'u8[8192]{0}', space=vmem, size = 0x2000, scoped, tag = 'input window, operand 8, single buffered']
    #allocation9 [shape = 's32[1]{0}', space=sflag, size = 0x4, scoped, tag = 'scoped memory for tpu_custom_call.1']
    #allocation10 [shape = 'u8[512]{0}', space=vmem, size = 0x400, scoped, tag = 'input window, operand 9, single buffered']
    #allocation11 [shape = 'u8[8192]{0}', space=vmem, size = 0x2000, scoped, tag = 'output window, operand 0']
    #allocation12 [shape = 'u8[16384]{0}', space=vmem, size = 0x4000, scoped, tag = 'output window, operand 1']
    #allocation13 [shape = 's32[2]{0}', space=sflag, size = 0x8, scoped, tag = 'scoped memory for tpu_custom_call.1']
    %21 = vsyncpa [#allocation3], 0
    %s22 = scalar_lea.sflag [#allocation3], 1
    %23 = vsyncpa %s22, 0
    %24 = vsyncpa [#allocation6], 0
    %25 = vsyncpa [#allocation9], 0
    %26 = vsyncpa [#allocation4], 0
    %s27 = scalar_lea.sflag [#allocation4], 1
    %28 = vsyncpa %s27, 0
    %29 = vsyncpa [#allocation13], 0
    %s30 = scalar_lea.sflag [#allocation13], 1
    %31 = vsyncpa %s30, 0
    loop: start=0, step=1, limit=4
    $region2: #{tpu_custom_call.1} parent=1 // loop_pre_header
      _
    $region3: #{tpu_custom_call.1} parent=1 // loop_header
      %s33 = sphi 0, %s37
      %p34 = scmp.ge.s32.totalorder %s33, 4
      %s40 = sphi 0, %s52
      %s41 = sphi 0, %s48
      %s42 = sphi 0, %s40
      %s43 = sphi 0, %s41
      %s44 = sphi 0, %s42
      %s45 = sphi 0, %s43
      %s57 = sphi 0, %s59
      %s60 = sphi 0, %s57
      %s61 = sphi 0, %s60
      %s77 = sphi 0, %s61
      %s85 = sphi 0, %s87
      %s88 = sphi 0, %s85
      %s89 = sphi 0, %s88
      %s105 = sphi 0, %s89
      %s111 = sphi 0, %s113
      %s114 = sphi 0, %s111
      %s115 = sphi 0, %s114
      %s131 = sphi 0, %s115
      %s137 = sphi 0, %s139
      %s140 = sphi 0, %s137
      %s141 = sphi 0, %s140
      %s157 = sphi 0, %s141
      %s161 = sphi 0, %s161
      %s163 = sphi 0, %s161
      %s164 = sphi 0, %s163
      %s178 = sphi 0, %s164
      %s182 = sphi 0, %s182
      %s184 = sphi 0, %s182
      %s185 = sphi 0, %s184
      %s199 = sphi 0, %s185
      %s203 = sphi 0, %s203
      %s205 = sphi 0, %s203
      %s206 = sphi 0, %s205
      %s220 = sphi 0, %s206
      %s224 = sphi 0, %s224
      %s226 = sphi 0, %s224
      %s227 = sphi 0, %s226
      %s241 = sphi 0, %s227
      %s245 = sphi 0, %s245
      %s247 = sphi 0, %s245
      %s248 = sphi 0, %s247
      %s262 = sphi 0, %s248
      %s266 = sphi 0, %s266
      %s268 = sphi 0, %s266
      %s269 = sphi 0, %s268
      %s283 = sphi 0, %s269
      %s287 = sphi 0, %s287
      %s289 = sphi 0, %s287
      %s290 = sphi 0, %s289
      %s304 = sphi 0, %s290
      %s308 = sphi 0, %s308
      %s310 = sphi 0, %s308
      %s311 = sphi 0, %s310
      %s325 = sphi 0, %s311
      %s329 = sphi 0, %s329
      %s331 = sphi 0, %s329
      %s332 = sphi 0, %s331
      %s346 = sphi 0, %s332
      %s350 = sphi 0, %s350
      %s352 = sphi 0, %s350
      %s353 = sphi 0, %s352
      %s367 = sphi 0, %s353
      %s375 = sphi 0, %s377
      %s378 = sphi 0, %s375
      %s379 = sphi 0, %s378
      %s395 = sphi 0, %s379
      %s403 = sphi 0, %s405
      %s406 = sphi 0, %s403
      %s407 = sphi 0, %s406
      %s423 = sphi 0, %s407
    $region4: #{tpu_custom_call.1} parent=1 // loop_header_branch
      %36 = sbr.rel (%p34) target = $region8
    $region5: #{tpu_custom_call.1} parent=1 // loop_body
      %s38 = ssub.s32 %s33, 1
      %s39 = ssub.s32 %s33, 2
      %s46 = sadd.s32 1, %s41
      %p47 = scmp.ge.s32.totalorder %s46, 1
      %s48 = scalar_select %p47, 0, %s46
      %s49 = sadd.s32 1, %s40
      %s50 = scalar_select %p47, %s49, %s40
      %p51 = scmp.ge.s32.totalorder %s50, 2
      %s52 = scalar_select %p51, 0, %s50
      %s53 = ssub.s32 %s40, %s52
      %s54 = ssub.s32 %s41, %s48
      %s55 = sor.u32 %s53, %s54
      %p56 = scmp.eq.s32.totalorder %s55, 0
      %s58 = sadd.s32 %s57, 1
      %s59 = scalar_select %p56, %s57, %s58
      %p62 = pneg %p56
      %p63 = scmp.eq.s32.totalorder %s33, 1
      %p64 = por %p62, %p63
      %p65 = scmp.ne.s32.totalorder %s57, %s60
      %p66 = scmp.eq.s32.totalorder %s33, 0
      %p67 = por %p65, %p66
      %p68 = scmp.ne.s32.totalorder %s57, %s60
      %p69 = scmp.eq.s32.totalorder %s38, 1
      %p70 = por %p68, %p69
      %p71 = scmp.ne.s32.totalorder %s60, %s61
      %p72 = scmp.eq.s32.totalorder %s38, 0
      %p73 = por %p71, %p72
      %p74 = scmp.ne.s32.totalorder %s60, %s61
      %p75 = scmp.eq.s32.totalorder %s39, 1
      %p76 = por %p74, %p75
      %p78 = scmp.ne.s32.totalorder %s61, %s77
      %p79 = scmp.eq.s32.totalorder %s39, 0
      %p80 = por %p78, %p79
      %s81 = ssub.s32 %s40, %s52
      %s82 = ssub.s32 %s41, %s48
      %s83 = sor.u32 %s81, %s82
      %p84 = scmp.eq.s32.totalorder %s83, 0
      %s86 = sadd.s32 %s85, 1
      %s87 = scalar_select %p84, %s85, %s86
      %p90 = pneg %p84
      %p91 = scmp.eq.s32.totalorder %s33, 1
      %p92 = por %p90, %p91
      %p93 = scmp.ne.s32.totalorder %s85, %s88
      %p94 = scmp.eq.s32.totalorder %s33, 0
      %p95 = por %p93, %p94
      %p96 = scmp.ne.s32.totalorder %s85, %s88
      %p97 = scmp.eq.s32.totalorder %s38, 1
      %p98 = por %p96, %p97
      %p99 = scmp.ne.s32.totalorder %s88, %s89
      %p100 = scmp.eq.s32.totalorder %s38, 0
      %p101 = por %p99, %p100
      %p102 = scmp.ne.s32.totalorder %s88, %s89
      %p103 = scmp.eq.s32.totalorder %s39, 1
      %p104 = por %p102, %p103
      %p106 = scmp.ne.s32.totalorder %s89, %s105
      %p107 = scmp.eq.s32.totalorder %s39, 0
      %p108 = por %p106, %p107
      %s109 = ssub.s32 %s40, %s52
      %p110 = scmp.eq.s32.totalorder %s109, 0
      %s112 = sadd.s32 %s111, 1
      %s113 = scalar_select %p110, %s111, %s112
      %p116 = pneg %p110
      %p117 = scmp.eq.s32.totalorder %s33, 1
      %p118 = por %p116, %p117
      %p119 = scmp.ne.s32.totalorder %s111, %s114
      %p120 = scmp.eq.s32.totalorder %s33, 0
      %p121 = por %p119, %p120
      %p122 = scmp.ne.s32.totalorder %s111, %s114
      %p123 = scmp.eq.s32.totalorder %s38, 1
      %p124 = por %p122, %p123
      %p125 = scmp.ne.s32.totalorder %s114, %s115
      %p126 = scmp.eq.s32.totalorder %s38, 0
      %p127 = por %p125, %p126
      %p128 = scmp.ne.s32.totalorder %s114, %s115
      %p129 = scmp.eq.s32.totalorder %s39, 1
      %p130 = por %p128, %p129
      %p132 = scmp.ne.s32.totalorder %s115, %s131
      %p133 = scmp.eq.s32.totalorder %s39, 0
      %p134 = por %p132, %p133
      %s135 = ssub.s32 %s40, %s52
      %p136 = scmp.eq.s32.totalorder %s135, 0
      %s138 = sadd.s32 %s137, 1
      %s139 = scalar_select %p136, %s137, %s138
      %p142 = pneg %p136
      %p143 = scmp.eq.s32.totalorder %s33, 1
      %p144 = por %p142, %p143
      %p145 = scmp.ne.s32.totalorder %s137, %s140
      %p146 = scmp.eq.s32.totalorder %s33, 0
      %p147 = por %p145, %p146
      %p148 = scmp.ne.s32.totalorder %s137, %s140
      %p149 = scmp.eq.s32.totalorder %s38, 1
      %p150 = por %p148, %p149
      %p151 = scmp.ne.s32.totalorder %s140, %s141
      %p152 = scmp.eq.s32.totalorder %s38, 0
      %p153 = por %p151, %p152
      %p154 = scmp.ne.s32.totalorder %s140, %s141
      %p155 = scmp.eq.s32.totalorder %s39, 1
      %p156 = por %p154, %p155
      %p158 = scmp.ne.s32.totalorder %s141, %s157
      %p159 = scmp.eq.s32.totalorder %s39, 0
      %p160 = por %p158, %p159
      %s162 = sadd.s32 %s161, 1
      %p165 = scmp.eq.s32.totalorder %s33, 1
      %p166 = scmp.ne.s32.totalorder %s161, %s163
      %p167 = scmp.eq.s32.totalorder %s33, 0
      %p168 = por %p166, %p167
      %p169 = scmp.ne.s32.totalorder %s161, %s163
      %p170 = scmp.eq.s32.totalorder %s38, 1
      %p171 = por %p169, %p170
      %p172 = scmp.ne.s32.totalorder %s163, %s164
      %p173 = scmp.eq.s32.totalorder %s38, 0
      %p174 = por %p172, %p173
      %p175 = scmp.ne.s32.totalorder %s163, %s164
      %p176 = scmp.eq.s32.totalorder %s39, 1
      %p177 = por %p175, %p176
      %p179 = scmp.ne.s32.totalorder %s164, %s178
      %p180 = scmp.eq.s32.totalorder %s39, 0
      %p181 = por %p179, %p180
      %s183 = sadd.s32 %s182, 1
      %p186 = scmp.eq.s32.totalorder %s33, 1
      %p187 = scmp.ne.s32.totalorder %s182, %s184
      %p188 = scmp.eq.s32.totalorder %s33, 0
      %p189 = por %p187, %p188
      %p190 = scmp.ne.s32.totalorder %s182, %s184
      %p191 = scmp.eq.s32.totalorder %s38, 1
      %p192 = por %p190, %p191
      %p193 = scmp.ne.s32.totalorder %s184, %s185
      %p194 = scmp.eq.s32.totalorder %s38, 0
      %p195 = por %p193, %p194
      %p196 = scmp.ne.s32.totalorder %s184, %s185
      %p197 = scmp.eq.s32.totalorder %s39, 1
      %p198 = por %p196, %p197
      %p200 = scmp.ne.s32.totalorder %s185, %s199
      %p201 = scmp.eq.s32.totalorder %s39, 0
      %p202 = por %p200, %p201
      %s204 = sadd.s32 %s203, 1
      %p207 = scmp.eq.s32.totalorder %s33, 1
      %p208 = scmp.ne.s32.totalorder %s203, %s205
      %p209 = scmp.eq.s32.totalorder %s33, 0
      %p210 = por %p208, %p209
      %p211 = scmp.ne.s32.totalorder %s203, %s205
      %p212 = scmp.eq.s32.totalorder %s38, 1
      %p213 = por %p211, %p212
      %p214 = scmp.ne.s32.totalorder %s205, %s206
      %p215 = scmp.eq.s32.totalorder %s38, 0
      %p216 = por %p214, %p215
      %p217 = scmp.ne.s32.totalorder %s205, %s206
      %p218 = scmp.eq.s32.totalorder %s39, 1
      %p219 = por %p217, %p218
      %p221 = scmp.ne.s32.totalorder %s206, %s220
      %p222 = scmp.eq.s32.totalorder %s39, 0
      %p223 = por %p221, %p222
      %s225 = sadd.s32 %s224, 1
      %p228 = scmp.eq.s32.totalorder %s33, 1
      %p229 = scmp.ne.s32.totalorder %s224, %s226
      %p230 = scmp.eq.s32.totalorder %s33, 0
      %p231 = por %p229, %p230
      %p232 = scmp.ne.s32.totalorder %s224, %s226
      %p233 = scmp.eq.s32.totalorder %s38, 1
      %p234 = por %p232, %p233
      %p235 = scmp.ne.s32.totalorder %s226, %s227
      %p236 = scmp.eq.s32.totalorder %s38, 0
      %p237 = por %p235, %p236
      %p238 = scmp.ne.s32.totalorder %s226, %s227
      %p239 = scmp.eq.s32.totalorder %s39, 1
      %p240 = por %p238, %p239
      %p242 = scmp.ne.s32.totalorder %s227, %s241
      %p243 = scmp.eq.s32.totalorder %s39, 0
      %p244 = por %p242, %p243
      %s246 = sadd.s32 %s245, 1
      %p249 = scmp.eq.s32.totalorder %s33, 1
      %p250 = scmp.ne.s32.totalorder %s245, %s247
      %p251 = scmp.eq.s32.totalorder %s33, 0
      %p252 = por %p250, %p251
      %p253 = scmp.ne.s32.totalorder %s245, %s247
      %p254 = scmp.eq.s32.totalorder %s38, 1
      %p255 = por %p253, %p254
      %p256 = scmp.ne.s32.totalorder %s247, %s248
      %p257 = scmp.eq.s32.totalorder %s38, 0
      %p258 = por %p256, %p257
      %p259 = scmp.ne.s32.totalorder %s247, %s248
      %p260 = scmp.eq.s32.totalorder %s39, 1
      %p261 = por %p259, %p260
      %p263 = scmp.ne.s32.totalorder %s248, %s262
      %p264 = scmp.eq.s32.totalorder %s39, 0
      %p265 = por %p263, %p264
      %s267 = sadd.s32 %s266, 1
      %p270 = scmp.eq.s32.totalorder %s33, 1
      %p271 = scmp.ne.s32.totalorder %s266, %s268
      %p272 = scmp.eq.s32.totalorder %s33, 0
      %p273 = por %p271, %p272
      %p274 = scmp.ne.s32.totalorder %s266, %s268
      %p275 = scmp.eq.s32.totalorder %s38, 1
      %p276 = por %p274, %p275
      %p277 = scmp.ne.s32.totalorder %s268, %s269
      %p278 = scmp.eq.s32.totalorder %s38, 0
      %p279 = por %p277, %p278
      %p280 = scmp.ne.s32.totalorder %s268, %s269
      %p281 = scmp.eq.s32.totalorder %s39, 1
      %p282 = por %p280, %p281
      %p284 = scmp.ne.s32.totalorder %s269, %s283
      %p285 = scmp.eq.s32.totalorder %s39, 0
      %p286 = por %p284, %p285
      %s288 = sadd.s32 %s287, 1
      %p291 = scmp.eq.s32.totalorder %s33, 1
      %p292 = scmp.ne.s32.totalorder %s287, %s289
      %p293 = scmp.eq.s32.totalorder %s33, 0
      %p294 = por %p292, %p293
      %p295 = scmp.ne.s32.totalorder %s287, %s289
      %p296 = scmp.eq.s32.totalorder %s38, 1
      %p297 = por %p295, %p296
      %p298 = scmp.ne.s32.totalorder %s289, %s290
      %p299 = scmp.eq.s32.totalorder %s38, 0
      %p300 = por %p298, %p299
      %p301 = scmp.ne.s32.totalorder %s289, %s290
      %p302 = scmp.eq.s32.totalorder %s39, 1
      %p303 = por %p301, %p302
      %p305 = scmp.ne.s32.totalorder %s290, %s304
      %p306 = scmp.eq.s32.totalorder %s39, 0
      %p307 = por %p305, %p306
      %s309 = sadd.s32 %s308, 1
      %p312 = scmp.eq.s32.totalorder %s33, 1
      %p313 = scmp.ne.s32.totalorder %s308, %s310
      %p314 = scmp.eq.s32.totalorder %s33, 0
      %p315 = por %p313, %p314
      %p316 = scmp.ne.s32.totalorder %s308, %s310
      %p317 = scmp.eq.s32.totalorder %s38, 1
      %p318 = por %p316, %p317
      %p319 = scmp.ne.s32.totalorder %s310, %s311
      %p320 = scmp.eq.s32.totalorder %s38, 0
      %p321 = por %p319, %p320
      %p322 = scmp.ne.s32.totalorder %s310, %s311
      %p323 = scmp.eq.s32.totalorder %s39, 1
      %p324 = por %p322, %p323
      %p326 = scmp.ne.s32.totalorder %s311, %s325
      %p327 = scmp.eq.s32.totalorder %s39, 0
      %p328 = por %p326, %p327
      %s330 = sadd.s32 %s329, 1
      %p333 = scmp.eq.s32.totalorder %s33, 1
      %p334 = scmp.ne.s32.totalorder %s329, %s331
      %p335 = scmp.eq.s32.totalorder %s33, 0
      %p336 = por %p334, %p335
      %p337 = scmp.ne.s32.totalorder %s329, %s331
      %p338 = scmp.eq.s32.totalorder %s38, 1
      %p339 = por %p337, %p338
      %p340 = scmp.ne.s32.totalorder %s331, %s332
      %p341 = scmp.eq.s32.totalorder %s38, 0
      %p342 = por %p340, %p341
      %p343 = scmp.ne.s32.totalorder %s331, %s332
      %p344 = scmp.eq.s32.totalorder %s39, 1
      %p345 = por %p343, %p344
      %p347 = scmp.ne.s32.totalorder %s332, %s346
      %p348 = scmp.eq.s32.totalorder %s39, 0
      %p349 = por %p347, %p348
      %s351 = sadd.s32 %s350, 1
      %p354 = scmp.eq.s32.totalorder %s33, 1
      %p355 = scmp.ne.s32.totalorder %s350, %s352
      %p356 = scmp.eq.s32.totalorder %s33, 0
      %p357 = por %p355, %p356
      %p358 = scmp.ne.s32.totalorder %s350, %s352
      %p359 = scmp.eq.s32.totalorder %s38, 1
      %p360 = por %p358, %p359
      %p361 = scmp.ne.s32.totalorder %s352, %s353
      %p362 = scmp.eq.s32.totalorder %s38, 0
      %p363 = por %p361, %p362
      %p364 = scmp.ne.s32.totalorder %s352, %s353
      %p365 = scmp.eq.s32.totalorder %s39, 1
      %p366 = por %p364, %p365
      %p368 = scmp.ne.s32.totalorder %s353, %s367
      %p369 = scmp.eq.s32.totalorder %s39, 0
      %p370 = por %p368, %p369
      %s371 = ssub.s32 %s40, %s52
      %s372 = ssub.s32 %s41, %s48
      %s373 = sor.u32 %s371, %s372
      %p374 = scmp.eq.s32.totalorder %s373, 0
      %s376 = sadd.s32 %s375, 1
      %s377 = scalar_select %p374, %s375, %s376
      %p380 = pneg %p374
      %p381 = scmp.eq.s32.totalorder %s33, 1
      %p382 = por %p380, %p381
      %p383 = scmp.ne.s32.totalorder %s375, %s378
      %p384 = scmp.eq.s32.totalorder %s33, 0
      %p385 = por %p383, %p384
      %p386 = scmp.ne.s32.totalorder %s375, %s378
      %p387 = scmp.eq.s32.totalorder %s38, 1
      %p388 = por %p386, %p387
      %p389 = scmp.ne.s32.totalorder %s378, %s379
      %p390 = scmp.eq.s32.totalorder %s38, 0
      %p391 = por %p389, %p390
      %p392 = scmp.ne.s32.totalorder %s378, %s379
      %p393 = scmp.eq.s32.totalorder %s39, 1
      %p394 = por %p392, %p393
      %p396 = scmp.ne.s32.totalorder %s379, %s395
      %p397 = scmp.eq.s32.totalorder %s39, 0
      %p398 = por %p396, %p397
      %s399 = ssub.s32 %s40, %s52
      %s400 = ssub.s32 %s41, %s48
      %s401 = sor.u32 %s399, %s400
      %p402 = scmp.eq.s32.totalorder %s401, 0
      %s404 = sadd.s32 %s403, 1
      %s405 = scalar_select %p402, %s403, %s404
      %p408 = pneg %p402
      %p409 = scmp.eq.s32.totalorder %s33, 1
      %p410 = por %p408, %p409
      %p411 = scmp.ne.s32.totalorder %s403, %s406
      %p412 = scmp.eq.s32.totalorder %s33, 0
      %p413 = por %p411, %p412
      %p414 = scmp.ne.s32.totalorder %s403, %s406
      %p415 = scmp.eq.s32.totalorder %s38, 1
      %p416 = por %p414, %p415
      %p417 = scmp.ne.s32.totalorder %s406, %s407
      %p418 = scmp.eq.s32.totalorder %s38, 0
      %p419 = por %p417, %p418
      %p420 = scmp.ne.s32.totalorder %s406, %s407
      %p421 = scmp.eq.s32.totalorder %s39, 1
      %p422 = por %p420, %p421
      %p424 = scmp.ne.s32.totalorder %s407, %s423
      %p425 = scmp.eq.s32.totalorder %s39, 0
      %p426 = por %p424, %p425
      %p427 = scmp.le.s32.totalorder 1, %s33
      %p428 = scmp.lt.s32.totalorder %s33, 3
      %p429 = pnand %p427, %p428
      %p430 = pneg %p429
      // Predicated region
      $region9: #{tpu_custom_call.1} parent=5 // pred_check
        _
      $region10: #{tpu_custom_call.1} parent=5 // pred_check_branch
        %432 = sbr.rel (%p429) target = $region12
      $region11: #{tpu_custom_call.1} parent=5 // pred_region
        %s433 = ssub.s32 %s33, 1
        // Predicated region
        $region13: #{tpu_custom_call.1} parent=11 // pred_check
          %p434 = pneg %p174
        $region14: #{tpu_custom_call.1} parent=11 // pred_check_branch
          %436 = sbr.rel (%p434) target = $region16
        $region15: #{tpu_custom_call.1} parent=11 // pred_region
          %s438 = ssub.s32 256, 256
          %439 = vsyncadd [#allocation6], %s438
          %s440 = sshll.u32 [#allocation5], 4
          %s441 = int_to_ptr.vmem [resolvable:$true] %s440
          %446 = dma.hbm_to_vmem [thread:$0]  %s4, 256, %s441, [#allocation6], 64, 64, 4
        $region16: #{tpu_custom_call.1} parent=11 // pred_fallthru
          _
        // Predicated region
        $region17: #{tpu_custom_call.1} parent=11 // pred_check
          %p447 = pneg %p195
        $region18: #{tpu_custom_call.1} parent=11 // pred_check_branch
          %449 = sbr.rel (%p447) target = $region20
        $region19: #{tpu_custom_call.1} parent=11 // pred_region
          _
        $region20: #{tpu_custom_call.1} parent=11 // pred_fallthru
          _
        // Predicated region
        $region21: #{tpu_custom_call.1} parent=11 // pred_check
          %p450 = pneg %p216
        $region22: #{tpu_custom_call.1} parent=11 // pred_check_branch
          %452 = sbr.rel (%p450) target = $region24
        $region23: #{tpu_custom_call.1} parent=11 // pred_region
          _
        $region24: #{tpu_custom_call.1} parent=11 // pred_fallthru
          _
        // Predicated region
        $region25: #{tpu_custom_call.1} parent=11 // pred_check
          %p453 = pneg %p237
        $region26: #{tpu_custom_call.1} parent=11 // pred_check_branch
          %455 = sbr.rel (%p453) target = $region28
        $region27: #{tpu_custom_call.1} parent=11 // pred_region
          %s457 = ssub.s32 16, 16
          %458 = vsyncadd [#allocation6], %s457
          %s460 = sshll.u32 [#allocation7], 4
          %s461 = int_to_ptr.vmem [resolvable:$true] %s460
          %463 = dma.hbm_to_vmem [thread:$0]  %s7, 16, %s461, [#allocation6]
        $region28: #{tpu_custom_call.1} parent=11 // pred_fallthru
          _
        // Predicated region
        $region29: #{tpu_custom_call.1} parent=11 // pred_check
          %p464 = pneg %p258
        $region30: #{tpu_custom_call.1} parent=11 // pred_check_branch
          %466 = sbr.rel (%p464) target = $region32
        $region31: #{tpu_custom_call.1} parent=11 // pred_region
          %s468 = ssub.s32 256, 256
          %469 = vsyncadd [#allocation9], %s468
          %s470 = sshll.u32 [#allocation8], 4
          %s471 = int_to_ptr.vmem [resolvable:$true] %s470
          %476 = dma.hbm_to_vmem [thread:$0]  %s8, 256, %s471, [#allocation9], 64, 64, 4
        $region32: #{tpu_custom_call.1} parent=11 // pred_fallthru
          _
        // Predicated region
        $region33: #{tpu_custom_call.1} parent=11 // pred_check
          %p477 = pneg %p279
        $region34: #{tpu_custom_call.1} parent=11 // pred_check_branch
          %479 = sbr.rel (%p477) target = $region36
        $region35: #{tpu_custom_call.1} parent=11 // pred_region
          %s481 = ssub.s32 16, 16
          %482 = vsyncadd [#allocation9], %s481
          %s484 = sshll.u32 [#allocation10], 4
          %s485 = int_to_ptr.vmem [resolvable:$true] %s484
          %487 = dma.hbm_to_vmem [thread:$0]  %s9, 16, %s485, [#allocation9]
        $region36: #{tpu_custom_call.1} parent=11 // pred_fallthru
          _
        // Predicated region
        $region37: #{tpu_custom_call.1} parent=11 // pred_check
          %p488 = pneg %p300
        $region38: #{tpu_custom_call.1} parent=11 // pred_check_branch
          %490 = sbr.rel (%p488) target = $region40
        $region39: #{tpu_custom_call.1} parent=11 // pred_region
          _
        $region40: #{tpu_custom_call.1} parent=11 // pred_fallthru
          _
        // Predicated region
        $region41: #{tpu_custom_call.1} parent=11 // pred_check
          %p491 = pneg %p321
        $region42: #{tpu_custom_call.1} parent=11 // pred_check_branch
          %493 = sbr.rel (%p491) target = $region44
        $region43: #{tpu_custom_call.1} parent=11 // pred_region
          _
        $region44: #{tpu_custom_call.1} parent=11 // pred_fallthru
          _
        // Predicated region
        $region45: #{tpu_custom_call.1} parent=11 // pred_check
          %p494 = pneg %p342
        $region46: #{tpu_custom_call.1} parent=11 // pred_check_branch
          %496 = sbr.rel (%p494) target = $region48
        $region47: #{tpu_custom_call.1} parent=11 // pred_region
          _
        $region48: #{tpu_custom_call.1} parent=11 // pred_fallthru
          _
        // Predicated region
        $region49: #{tpu_custom_call.1} parent=11 // pred_check
          %p497 = pneg %p363
        $region50: #{tpu_custom_call.1} parent=11 // pred_check_branch
          %499 = sbr.rel (%p497) target = $region52
        $region51: #{tpu_custom_call.1} parent=11 // pred_region
          _
        $region52: #{tpu_custom_call.1} parent=11 // pred_fallthru
          _
      $region12: #{tpu_custom_call.1} parent=5 // pred_fallthru
        _
      %p500 = scmp.lt.s32.totalorder %s33, 2
      // Predicated region
      $region53: #{tpu_custom_call.1} parent=5 // pred_check
        %p501 = pneg %p500
      $region54: #{tpu_custom_call.1} parent=5 // pred_check_branch
        %503 = sbr.rel (%p501) target = $region56
      $region55: #{tpu_custom_call.1} parent=5 // pred_region
        // Predicated region
        $region57: #{tpu_custom_call.1} parent=55 // pred_check
          %p504 = pneg %p67
        $region58: #{tpu_custom_call.1} parent=55 // pred_check_branch
          %506 = sbr.rel (%p504) target = $region60
        $region59: #{tpu_custom_call.1} parent=55 // pred_region
          %p507 = scmp.lt.s32.totalorder %s40, 1
          %s508 = scalar_select %p507, %s40, 1
          %p509 = scmp.lt.s32.totalorder %s41, 0
          %s510 = scalar_select %p509, %s41, 0
          %s511 = sadd.s32 %s510, %s508
          %s512 = smul.addr %s511, 8
          %s513 = scalar_lea.vmem %s0, %s512
        $region60: #{tpu_custom_call.1} parent=55 // pred_fallthru
          _
        // Predicated region
        $region61: #{tpu_custom_call.1} parent=55 // pred_check
          %p514 = pneg %p95
        $region62: #{tpu_custom_call.1} parent=55 // pred_check_branch
          %516 = sbr.rel (%p514) target = $region64
        $region63: #{tpu_custom_call.1} parent=55 // pred_region
          %p517 = scmp.lt.s32.totalorder %s40, 1
          %s518 = scalar_select %p517, %s40, 1
          %p519 = scmp.lt.s32.totalorder %s41, 0
          %s520 = scalar_select %p519, %s41, 0
          %s521 = smul.addr %s518, 4
          %s522 = sadd.s32 %s520, %s521
          %s523 = smul.addr %s522, 4
          %s524 = scalar_lea.vmem %s1, %s523
        $region64: #{tpu_custom_call.1} parent=55 // pred_fallthru
          _
        // Predicated region
        $region65: #{tpu_custom_call.1} parent=55 // pred_check
          %p525 = pneg %p121
        $region66: #{tpu_custom_call.1} parent=55 // pred_check_branch
          %527 = sbr.rel (%p525) target = $region68
        $region67: #{tpu_custom_call.1} parent=55 // pred_region
          %p528 = scmp.lt.s32.totalorder %s40, 1
          %s529 = scalar_select %p528, %s40, 1
          %s530 = smul.addr %s529, 4
          %s531 = smul.addr %s530, 4
          %s532 = scalar_lea.vmem %s2, %s531
        $region68: #{tpu_custom_call.1} parent=55 // pred_fallthru
          _
        // Predicated region
        $region69: #{tpu_custom_call.1} parent=55 // pred_check
          %p533 = pneg %p147
        $region70: #{tpu_custom_call.1} parent=55 // pred_check_branch
          %535 = sbr.rel (%p533) target = $region72
        $region71: #{tpu_custom_call.1} parent=55 // pred_region
          %s536 = sand.u32 %s137, 1
          %s537 = scalar_lea.sflag [#allocation3], %s536
          %s538 = sand.u32 %s137, 1
          %s539 = smul.addr %s538, 16
          %s540 = scalar_lea.vmem [#allocation2], %s539
          %s542 = ssub.s32 256, 256
          %543 = vsyncadd %s537, %s542
          %s544 = smul.addr %s40, 4
          %s545 = smul.addr %s544, 64
          %s546 = scalar_lea.hbm %s3, %s545
          %s547 = sshll.u32 %s540, 4
          %s548 = int_to_ptr.vmem [resolvable:$true] %s547
          %553 = dma.hbm_to_vmem [thread:$0]  %s546, 256, %s548, %s537, 64, 64, 4
        $region72: #{tpu_custom_call.1} parent=55 // pred_fallthru
          _
      $region56: #{tpu_custom_call.1} parent=5 // pred_fallthru
        _
      %p554 = scmp.le.s32.totalorder 1, %s33
      %p555 = scmp.lt.s32.totalorder %s33, 3
      %p556 = pnand %p554, %p555
      %p557 = pneg %p556
      // Predicated region
      $region73: #{tpu_custom_call.1} parent=5 // pred_check
        _
      $region74: #{tpu_custom_call.1} parent=5 // pred_check_branch
        %559 = sbr.rel (%p556) target = $region76
      $region75: #{tpu_custom_call.1} parent=5 // pred_region
        %s560 = ssub.s32 %s33, 1
        %s561 = sand.u32 %s140, 1
        %s562 = scalar_lea.sflag [#allocation3], %s561
        %s563 = sand.u32 %s140, 1
        %s564 = smul.addr %s563, 16
        %s565 = scalar_lea.vmem [#allocation2], %s564
        // Predicated region
        $region77: #{tpu_custom_call.1} parent=75 // pred_check
          %p566 = pneg %p153
        $region78: #{tpu_custom_call.1} parent=75 // pred_check_branch
          %568 = sbr.rel (%p566) target = $region80
        $region79: #{tpu_custom_call.1} parent=75 // pred_region
          %569 = dma.done %s562, 256
        $region80: #{tpu_custom_call.1} parent=75 // pred_fallthru
          _
        // Predicated region
        $region81: #{tpu_custom_call.1} parent=75 // pred_check
          %p570 = pneg %p174
        $region82: #{tpu_custom_call.1} parent=75 // pred_check_branch
          %572 = sbr.rel (%p570) target = $region84
        $region83: #{tpu_custom_call.1} parent=75 // pred_region
          %573 = dma.done [#allocation6], 256
        $region84: #{tpu_custom_call.1} parent=75 // pred_fallthru
          _
        // Predicated region
        $region85: #{tpu_custom_call.1} parent=75 // pred_check
          %p574 = pneg %p237
        $region86: #{tpu_custom_call.1} parent=75 // pred_check_branch
          %576 = sbr.rel (%p574) target = $region88
        $region87: #{tpu_custom_call.1} parent=75 // pred_region
          %577 = dma.done [#allocation6], 16
        $region88: #{tpu_custom_call.1} parent=75 // pred_fallthru
          _
        // Predicated region
        $region89: #{tpu_custom_call.1} parent=75 // pred_check
          %p578 = pneg %p258
        $region90: #{tpu_custom_call.1} parent=75 // pred_check_branch
          %580 = sbr.rel (%p578) target = $region92
        $region91: #{tpu_custom_call.1} parent=75 // pred_region
          %581 = dma.done [#allocation9], 256
        $region92: #{tpu_custom_call.1} parent=75 // pred_fallthru
          _
        // Predicated region
        $region93: #{tpu_custom_call.1} parent=75 // pred_check
          %p582 = pneg %p279
        $region94: #{tpu_custom_call.1} parent=75 // pred_check_branch
          %584 = sbr.rel (%p582) target = $region96
        $region95: #{tpu_custom_call.1} parent=75 // pred_region
          %585 = dma.done [#allocation9], 16
        $region96: #{tpu_custom_call.1} parent=75 // pred_fallthru
          _
        %p586 = scmp.lt.s32.totalorder %s42, 1
        %s587 = scalar_select %p586, %s42, 1
        %p588 = scmp.lt.s32.totalorder %s43, 0
        %s589 = scalar_select %p588, %s43, 0
        %s590 = sadd.s32 %s589, %s587
        %s591 = smul.addr %s590, 8
        %s592 = scalar_lea.vmem %s0, %s591
        %p593 = pneg %p73
        %p594 = pneg %p70
        %p595 = scmp.lt.s32.totalorder %s42, 1
        %s596 = scalar_select %p595, %s42, 1
        %p597 = scmp.lt.s32.totalorder %s43, 0
        %s598 = scalar_select %p597, %s43, 0
        %s599 = smul.addr %s596, 4
        %s600 = sadd.s32 %s598, %s599
        %s601 = smul.addr %s600, 4
        %s602 = scalar_lea.vmem %s1, %s601
        %p603 = pneg %p101
        %p604 = pneg %p98
        %p605 = scmp.lt.s32.totalorder %s42, 1
        %s606 = scalar_select %p605, %s42, 1
        %s607 = smul.addr %s606, 4
        %s608 = smul.addr %s607, 4
        %s609 = scalar_lea.vmem %s2, %s608
        %p610 = pneg %p127
        %p611 = pneg %p124
        %s612 = sand.u32 %s140, 1
        %s613 = scalar_lea.sflag [#allocation3], %s612
        %s614 = sand.u32 %s140, 1
        %s615 = smul.addr %s614, 16
        %s616 = scalar_lea.vmem [#allocation2], %s615
        %p617 = pneg %p153
        %p618 = pneg %p150
        %p619 = pneg %p174
        %p620 = pneg %p171
        %p621 = pneg %p195
        %p622 = pneg %p192
        %p623 = pneg %p216
        %p624 = pneg %p213
        %p625 = pneg %p237
        %p626 = pneg %p234
        %p627 = pneg %p258
        %p628 = pneg %p255
        %p629 = pneg %p279
        %p630 = pneg %p276
        %p631 = pneg %p300
        %p632 = pneg %p297
        %p633 = pneg %p321
        %p634 = pneg %p318
        %p635 = pneg %p342
        %p636 = pneg %p339
        %p637 = pneg %p363
        %p638 = pneg %p360
        %p639 = pneg %p391
        %p640 = pneg %p388
        %s641 = sand.u32 %s378, 1
        %s642 = scalar_lea.sflag [#allocation4], %s641
        %s643 = sand.u32 %s378, 1
        %s644 = smul.addr %s643, 8
        %s645 = scalar_lea.vmem [#allocation11], %s644
        %p646 = pneg %p419
        %p647 = pneg %p416
        %s648 = sand.u32 %s406, 1
        %s649 = scalar_lea.sflag [#allocation13], %s648
        %s650 = sand.u32 %s406, 1
        %s651 = smul.addr %s650, 16
        %s652 = scalar_lea.vmem [#allocation12], %s651
        %p653 = scmp.lt.s32.totalorder %s42, 1
        %s654 = scalar_select %p653, %s42, 1
        %p655 = scmp.lt.s32.totalorder %s43, 0
        %s656 = scalar_select %p655, %s43, 0
        %s657 = sadd.s32 %s656, %s654
        %s658 = smul.addr %s657, 8
        %s659 = scalar_lea.vmem %s0, %s658
        %p660 = scmp.lt.s32.totalorder %s42, 1
        %s661 = scalar_select %p660, %s42, 1
        %p662 = scmp.lt.s32.totalorder %s43, 0
        %s663 = scalar_select %p662, %s43, 0
        %s664 = smul.addr %s661, 4
        %s665 = sadd.s32 %s663, %s664
        %s666 = smul.addr %s665, 4
        %s667 = scalar_lea.vmem %s1, %s666
        %p668 = scmp.lt.s32.totalorder %s42, 1
        %s669 = scalar_select %p668, %s42, 1
        %s670 = smul.addr %s669, 4
        %s671 = smul.addr %s670, 4
        %s672 = scalar_lea.vmem %s2, %s671
        %v674 = vld [vmem:[%s659] sm:$0xff]
        %v675 = vld [vmem:[%s667] sm:$0xf]
        %v676 = vld [vmem:[%s667 + $0x4] sm:$0xf]
        %v677 = vld [vmem:[%s667 + $0x8] sm:$0xf]
        %v678 = vld [vmem:[%s667 + $0xc] sm:$0xf]
        %v679 = vld [vmem:[%s672] sm:$0xf]
        %v680 = vld [vmem:[%s672 + $0x4] sm:$0xf]
        %v681 = vld [vmem:[%s672 + $0x8] sm:$0xf]
        %v682 = vld [vmem:[%s672 + $0xc] sm:$0xf]
        %v683 = vld [vmem:[%s565] sm:$0xf]
        %v684 = vld [vmem:[%s565 + $0x4] sm:$0xf]
        %v685 = vld [vmem:[%s565 + $0x8] sm:$0xf]
        %v686 = vld [vmem:[%s565 + $0xc] sm:$0xf]
        %vm687 = vcmask 64512
        %v689 = vsel %vm687, %v675, 0
        %v692 = vsel %vm687, %v679, 0
        %694 = vmatprep.subr.bf16.mxu0 0
        %695 = vmatpush1.bf16.xpose.msra.mxu0 0
        %696 = vmatprep.subr.bf16.mxu0 0
        %697 = vmatpush1.bf16.xpose.msra.mxu0 0
        %698 = vmatprep.subr.bf16.mxu0 0
        %699 = vmatpush1.bf16.xpose.msra.mxu0 0
        %700 = vmatprep.subr.bf16.mxu0 0
        %701 = vmatpush1.bf16.xpose.msra.mxu0 0
        %702 = vmatprep.subr.bf16.mxu0 0
        %703 = vmatpush1.bf16.xpose.msra.mxu0 0
        %704 = vmatprep.subr.bf16.mxu0 0
        %705 = vmatpush1.bf16.xpose.msra.mxu0 0
        %706 = vmatprep.subr.bf16.mxu0 0
        %707 = vmatpush1.bf16.xpose.msra.mxu0 0
        %708 = vmatprep.subr.bf16.mxu0 0
        %709 = vmatpush1.bf16.xpose.msra.mxu0 %v692
        %710 = vmatprep.subr.bf16.mxu0 0
        %711 = vmatpush2.bf16.xpose.msra.mxu0 0
        %712 = vmatprep.subr.bf16.mxu0 0
        %713 = vmatpush2.bf16.xpose.msra.mxu0 0
        %714 = vmatprep.subr.bf16.mxu0 0
        %715 = vmatpush2.bf16.xpose.msra.mxu0 0
        %716 = vmatprep.subr.bf16.mxu0 0
        %717 = vmatpush2.bf16.xpose.msra.mxu0 0
        %718 = vmatprep.subr.bf16.mxu0 0
        %719 = vmatpush2.bf16.xpose.msra.mxu0 0
        %720 = vmatprep.subr.bf16.mxu0 0
        %721 = vmatpush2.bf16.xpose.msra.mxu0 0
        %722 = vmatprep.subr.bf16.mxu0 0
        %723 = vmatpush2.bf16.xpose.msra.mxu0 0
        %724 = vmatprep.subr.bf16.mxu0 0
        %725 = vmatpush2.bf16.xpose.msra.mxu0 0
        %726 = vmatprep.mubr.bf16.mxu0 0
        %727 = vmatmul.mubr.bf16.gmra.mxu0 %v689
        %v728 = vpop.f32.mrf.mxu0
        %v729 = vadd.f32 0.0, %v728
        %v730 = vpop.f32.mrf.mxu0
        %v731 = vpop.f32.mrf.mxu0
        %v732 = vpop.f32.mrf.mxu0
        %733 = vdwg.mxu0
        %v735 = vsel %vm687, %v676, 0
        %v738 = vsel %vm687, %v680, 0
        %740 = vmatprep.subr.bf16.mxu0 0
        %741 = vmatpush1.bf16.xpose.msra.mxu0 0
        %742 = vmatprep.subr.bf16.mxu0 0
        %743 = vmatpush1.bf16.xpose.msra.mxu0 0
        %744 = vmatprep.subr.bf16.mxu0 0
        %745 = vmatpush1.bf16.xpose.msra.mxu0 0
        %746 = vmatprep.subr.bf16.mxu0 0
        %747 = vmatpush1.bf16.xpose.msra.mxu0 0
        %748 = vmatprep.subr.bf16.mxu0 0
        %749 = vmatpush1.bf16.xpose.msra.mxu0 0
        %750 = vmatprep.subr.bf16.mxu0 0
        %751 = vmatpush1.bf16.xpose.msra.mxu0 0
        %752 = vmatprep.subr.bf16.mxu0 0
        %753 = vmatpush1.bf16.xpose.msra.mxu0 0
        %754 = vmatprep.subr.bf16.mxu0 0
        %755 = vmatpush1.bf16.xpose.msra.mxu0 %v738
        %756 = vmatprep.subr.bf16.mxu0 0
        %757 = vmatpush2.bf16.xpose.msra.mxu0 0
        %758 = vmatprep.subr.bf16.mxu0 0
        %759 = vmatpush2.bf16.xpose.msra.mxu0 0
        %760 = vmatprep.subr.bf16.mxu0 0
        %761 = vmatpush2.bf16.xpose.msra.mxu0 0
        %762 = vmatprep.subr.bf16.mxu0 0
        %763 = vmatpush2.bf16.xpose.msra.mxu0 0
        %764 = vmatprep.subr.bf16.mxu0 0
        %765 = vmatpush2.bf16.xpose.msra.mxu0 0
        %766 = vmatprep.subr.bf16.mxu0 0
        %767 = vmatpush2.bf16.xpose.msra.mxu0 0
        %768 = vmatprep.subr.bf16.mxu0 0
        %769 = vmatpush2.bf16.xpose.msra.mxu0 0
        %770 = vmatprep.subr.bf16.mxu0 0
        %771 = vmatpush2.bf16.xpose.msra.mxu0 0
        %772 = vmatprep.mubr.bf16.mxu0 0
        %773 = vmatmul.mubr.bf16.gmra.mxu0 %v735
        %v774 = vpop.f32.mrf.mxu0
        %v775 = vadd.f32 0.0, %v774
        %v776 = vpop.f32.mrf.mxu0
        %v777 = vpop.f32.mrf.mxu0
        %v778 = vpop.f32.mrf.mxu0
        %779 = vdwg.mxu0
        %v781 = vsel %vm687, %v677, 0
        %v784 = vsel %vm687, %v681, 0
        %786 = vmatprep.subr.bf16.mxu0 0
        %787 = vmatpush1.bf16.xpose.msra.mxu0 0
        %788 = vmatprep.subr.bf16.mxu0 0
        %789 = vmatpush1.bf16.xpose.msra.mxu0 0
        %790 = vmatprep.subr.bf16.mxu0 0
        %791 = vmatpush1.bf16.xpose.msra.mxu0 0
        %792 = vmatprep.subr.bf16.mxu0 0
        %793 = vmatpush1.bf16.xpose.msra.mxu0 0
        %794 = vmatprep.subr.bf16.mxu0 0
        %795 = vmatpush1.bf16.xpose.msra.mxu0 0
        %796 = vmatprep.subr.bf16.mxu0 0
        %797 = vmatpush1.bf16.xpose.msra.mxu0 0
        %798 = vmatprep.subr.bf16.mxu0 0
        %799 = vmatpush1.bf16.xpose.msra.mxu0 0
        %800 = vmatprep.subr.bf16.mxu0 0
        %801 = vmatpush1.bf16.xpose.msra.mxu0 %v784
        %802 = vmatprep.subr.bf16.mxu0 0
        %803 = vmatpush2.bf16.xpose.msra.mxu0 0
        %804 = vmatprep.subr.bf16.mxu0 0
        %805 = vmatpush2.bf16.xpose.msra.mxu0 0
        %806 = vmatprep.subr.bf16.mxu0 0
        %807 = vmatpush2.bf16.xpose.msra.mxu0 0
        %808 = vmatprep.subr.bf16.mxu0 0
        %809 = vmatpush2.bf16.xpose.msra.mxu0 0
        %810 = vmatprep.subr.bf16.mxu0 0
        %811 = vmatpush2.bf16.xpose.msra.mxu0 0
        %812 = vmatprep.subr.bf16.mxu0 0
        %813 = vmatpush2.bf16.xpose.msra.mxu0 0
        %814 = vmatprep.subr.bf16.mxu0 0
        %815 = vmatpush2.bf16.xpose.msra.mxu0 0
        %816 = vmatprep.subr.bf16.mxu0 0
        %817 = vmatpush2.bf16.xpose.msra.mxu0 0
        %818 = vmatprep.mubr.bf16.mxu0 0
        %819 = vmatmul.mubr.bf16.gmra.mxu0 %v781
        %v820 = vpop.f32.mrf.mxu0
        %v821 = vadd.f32 0.0, %v820
        %v822 = vpop.f32.mrf.mxu0
        %v823 = vpop.f32.mrf.mxu0
        %v824 = vpop.f32.mrf.mxu0
        %825 = vdwg.mxu0
        %v827 = vsel %vm687, %v678, 0
        %v830 = vsel %vm687, %v682, 0
        %832 = vmatprep.subr.bf16.mxu0 0
        %833 = vmatpush1.bf16.xpose.msra.mxu0 0
        %834 = vmatprep.subr.bf16.mxu0 0
        %835 = vmatpush1.bf16.xpose.msra.mxu0 0
        %836 = vmatprep.subr.bf16.mxu0 0
        %837 = vmatpush1.bf16.xpose.msra.mxu0 0
        %838 = vmatprep.subr.bf16.mxu0 0
        %839 = vmatpush1.bf16.xpose.msra.mxu0 0
        %840 = vmatprep.subr.bf16.mxu0 0
        %841 = vmatpush1.bf16.xpose.msra.mxu0 0
        %842 = vmatprep.subr.bf16.mxu0 0
        %843 = vmatpush1.bf16.xpose.msra.mxu0 0
        %844 = vmatprep.subr.bf16.mxu0 0
        %845 = vmatpush1.bf16.xpose.msra.mxu0 0
        %846 = vmatprep.subr.bf16.mxu0 0
        %847 = vmatpush1.bf16.xpose.msra.mxu0 %v830
        %848 = vmatprep.subr.bf16.mxu0 0
        %849 = vmatpush2.bf16.xpose.msra.mxu0 0
        %850 = vmatprep.subr.bf16.mxu0 0
        %851 = vmatpush2.bf16.xpose.msra.mxu0 0
        %852 = vmatprep.subr.bf16.mxu0 0
        %853 = vmatpush2.bf16.xpose.msra.mxu0 0
        %854 = vmatprep.subr.bf16.mxu0 0
        %855 = vmatpush2.bf16.xpose.msra.mxu0 0
        %856 = vmatprep.subr.bf16.mxu0 0
        %857 = vmatpush2.bf16.xpose.msra.mxu0 0
        %858 = vmatprep.subr.bf16.mxu0 0
        %859 = vmatpush2.bf16.xpose.msra.mxu0 0
        %860 = vmatprep.subr.bf16.mxu0 0
        %861 = vmatpush2.bf16.xpose.msra.mxu0 0
        %862 = vmatprep.subr.bf16.mxu0 0
        %863 = vmatpush2.bf16.xpose.msra.mxu0 0
        %864 = vmatprep.mubr.bf16.mxu0 0
        %865 = vmatmul.mubr.bf16.gmra.mxu0 %v827
        %v866 = vpop.f32.mrf.mxu0
        %v867 = vadd.f32 0.0, %v866
        %v868 = vpop.f32.mrf.mxu0
        %v869 = vpop.f32.mrf.mxu0
        %v870 = vpop.f32.mrf.mxu0
        %871 = vdwg.mxu0
        %v872 = vsel %vm687, %v729, -inf
        %873 = vmax.xlane.f32.xlu0 %v872
        %v874 = vpop.xlane.xlu0 %873
        %v875 = vsel %vm687, %v775, -inf
        %876 = vmax.xlane.f32.xlu0 %v875
        %v877 = vpop.xlane.xlu0 %876
        %v878 = vsel %vm687, %v821, -inf
        %879 = vmax.xlane.f32.xlu0 %v878
        %v880 = vpop.xlane.xlu0 %879
        %v881 = vsel %vm687, %v867, -inf
        %882 = vmax.xlane.f32.xlu0 %v881
        %v883 = vpop.xlane.xlu0 %882
        %v884 = vsub.f32 %v729, %v874
        %v885 = vsub.f32 %v775, %v877
        %v886 = vsub.f32 %v821, %v880
        %v887 = vsub.f32 %v867, %v883
        %v888 = vmul.f32 %v884, 1.442695
        %v889 = vpow.pop %v888
        %v890 = vmul.f32 %v885, 1.442695
        %v891 = vpow.pop %v890
        %v892 = vmul.f32 %v886, 1.442695
        %v893 = vpow.pop %v892
        %v894 = vmul.f32 %v887, 1.442695
        %v895 = vpow.pop %v894
        %v896 = vsel %vm687, %v889, 0.0
        %897 = vadd.xlane.f32.xlu0 %v896
        %v898 = vpop.xlane.xlu0 %897
        %v899 = vsel %vm687, %v891, 0.0
        %900 = vadd.xlane.f32.xlu0 %v899
        %v901 = vpop.xlane.xlu0 %900
        %v902 = vsel %vm687, %v893, 0.0
        %903 = vadd.xlane.f32.xlu0 %v902
        %v904 = vpop.xlane.xlu0 %903
        %v905 = vsel %vm687, %v895, 0.0
        %906 = vadd.xlane.f32.xlu0 %v905
        %v907 = vpop.xlane.xlu0 %906
        %v908 = vrcp.pop %v898
        %v909 = vrcp.pop %v901
        %v910 = vrcp.pop %v904
        %v911 = vrcp.pop %v907
        %v912 = vmul.f32 %v889, %v908
        %v913 = vmul.f32 %v891, %v909
        %v914 = vmul.f32 %v893, %v910
        %v915 = vmul.f32 %v895, %v911
        %v916 = vpack.c.bf16 %v912, %v912
        %v917 = vpack.c.bf16 %v913, %v913
        %v918 = vpack.c.bf16 %v914, %v914
        %v919 = vpack.c.bf16 %v915, %v915
        %vm920 = vcmask 60416
        %921 = vst.msk [vmem:[%s652] sm:$0xf] %vm920, %v916
        %922 = vst.msk [vmem:[%s652 + $0x4] sm:$0xf] %vm920, %v917
        %923 = vst.msk [vmem:[%s652 + $0x8] sm:$0xf] %vm920, %v918
        %924 = vst.msk [vmem:[%s652 + $0xc] sm:$0xf] %vm920, %v919
        %v926 = vsel %vm687, %v916, 0
        %vm928 = vcmask 1043456
        %v930 = vsel %vm928, %v683, 0
        %932 = vmatprep.subr.bf16.mxu0 0
        %933 = vmatpush1.bf16.msra.mxu0 0
        %934 = vmatprep.subr.bf16.mxu0 0
        %935 = vmatpush1.bf16.msra.mxu0 0
        %936 = vmatprep.subr.bf16.mxu0 0
        %937 = vmatpush1.bf16.msra.mxu0 0
        %938 = vmatprep.subr.bf16.mxu0 0
        %939 = vmatpush1.bf16.msra.mxu0 0
        %940 = vmatprep.subr.bf16.mxu0 0
        %941 = vmatpush1.bf16.msra.mxu0 0
        %942 = vmatprep.subr.bf16.mxu0 0
        %943 = vmatpush1.bf16.msra.mxu0 0
        %944 = vmatprep.subr.bf16.mxu0 0
        %945 = vmatpush1.bf16.msra.mxu0 0
        %946 = vmatprep.subr.bf16.mxu0 0
        %947 = vmatpush1.bf16.msra.mxu0 %v930
        %948 = vmatprep.subr.bf16.mxu0 0
        %949 = vmatpush2.bf16.msra.mxu0 0
        %950 = vmatprep.subr.bf16.mxu0 0
        %951 = vmatpush2.bf16.msra.mxu0 0
        %952 = vmatprep.subr.bf16.mxu0 0
        %953 = vmatpush2.bf16.msra.mxu0 0
        %954 = vmatprep.subr.bf16.mxu0 0
        %955 = vmatpush2.bf16.msra.mxu0 0
        %956 = vmatprep.subr.bf16.mxu0 0
        %957 = vmatpush2.bf16.msra.mxu0 0
        %958 = vmatprep.subr.bf16.mxu0 0
        %959 = vmatpush2.bf16.msra.mxu0 0
        %960 = vmatprep.subr.bf16.mxu0 0
        %961 = vmatpush2.bf16.msra.mxu0 0
        %962 = vmatprep.subr.bf16.mxu0 0
        %963 = vmatpush2.bf16.msra.mxu0 0
        %964 = vmatprep.mubr.bf16.mxu0 0
        %965 = vmatmul.mubr.bf16.gmra.mxu0 %v926
        %v966 = vpop.f32.mrf.mxu0
        %v967 = vadd.f32 0.0, %v966
        %v968 = vpop.f32.mrf.mxu0
        %v969 = vpop.f32.mrf.mxu0
        %v970 = vpop.f32.mrf.mxu0
        %971 = vdwg.mxu0
        %v973 = vsel %vm687, %v917, 0
        %v976 = vsel %vm928, %v684, 0
        %978 = vmatprep.subr.bf16.mxu0 0
        %979 = vmatpush1.bf16.msra.mxu0 0
        %980 = vmatprep.subr.bf16.mxu0 0
        %981 = vmatpush1.bf16.msra.mxu0 0
        %982 = vmatprep.subr.bf16.mxu0 0
        %983 = vmatpush1.bf16.msra.mxu0 0
        %984 = vmatprep.subr.bf16.mxu0 0
        %985 = vmatpush1.bf16.msra.mxu0 0
        %986 = vmatprep.subr.bf16.mxu0 0
        %987 = vmatpush1.bf16.msra.mxu0 0
        %988 = vmatprep.subr.bf16.mxu0 0
        %989 = vmatpush1.bf16.msra.mxu0 0
        %990 = vmatprep.subr.bf16.mxu0 0
        %991 = vmatpush1.bf16.msra.mxu0 0
        %992 = vmatprep.subr.bf16.mxu0 0
        %993 = vmatpush1.bf16.msra.mxu0 %v976
        %994 = vmatprep.subr.bf16.mxu0 0
        %995 = vmatpush2.bf16.msra.mxu0 0
        %996 = vmatprep.subr.bf16.mxu0 0
        %997 = vmatpush2.bf16.msra.mxu0 0
        %998 = vmatprep.subr.bf16.mxu0 0
        %999 = vmatpush2.bf16.msra.mxu0 0
        %1000 = vmatprep.subr.bf16.mxu0 0
        %1001 = vmatpush2.bf16.msra.mxu0 0
        %1002 = vmatprep.subr.bf16.mxu0 0
        %1003 = vmatpush2.bf16.msra.mxu0 0
        %1004 = vmatprep.subr.bf16.mxu0 0
        %1005 = vmatpush2.bf16.msra.mxu0 0
        %1006 = vmatprep.subr.bf16.mxu0 0
        %1007 = vmatpush2.bf16.msra.mxu0 0
        %1008 = vmatprep.subr.bf16.mxu0 0
        %1009 = vmatpush2.bf16.msra.mxu0 0
        %1010 = vmatprep.mubr.bf16.mxu0 0
        %1011 = vmatmul.mubr.bf16.gmra.mxu0 %v973
        %v1012 = vpop.f32.mrf.mxu0
        %v1013 = vadd.f32 0.0, %v1012
        %v1014 = vpop.f32.mrf.mxu0
        %v1015 = vpop.f32.mrf.mxu0
        %v1016 = vpop.f32.mrf.mxu0
        %1017 = vdwg.mxu0
        %v1019 = vsel %vm687, %v918, 0
        %v1022 = vsel %vm928, %v685, 0
        %1024 = vmatprep.subr.bf16.mxu0 0
        %1025 = vmatpush1.bf16.msra.mxu0 0
        %1026 = vmatprep.subr.bf16.mxu0 0
        %1027 = vmatpush1.bf16.msra.mxu0 0
        %1028 = vmatprep.subr.bf16.mxu0 0
        %1029 = vmatpush1.bf16.msra.mxu0 0
        %1030 = vmatprep.subr.bf16.mxu0 0
        %1031 = vmatpush1.bf16.msra.mxu0 0
        %1032 = vmatprep.subr.bf16.mxu0 0
        %1033 = vmatpush1.bf16.msra.mxu0 0
        %1034 = vmatprep.subr.bf16.mxu0 0
        %1035 = vmatpush1.bf16.msra.mxu0 0
        %1036 = vmatprep.subr.bf16.mxu0 0
        %1037 = vmatpush1.bf16.msra.mxu0 0
        %1038 = vmatprep.subr.bf16.mxu0 0
        %1039 = vmatpush1.bf16.msra.mxu0 %v1022
        %1040 = vmatprep.subr.bf16.mxu0 0
        %1041 = vmatpush2.bf16.msra.mxu0 0
        %1042 = vmatprep.subr.bf16.mxu0 0
        %1043 = vmatpush2.bf16.msra.mxu0 0
        %1044 = vmatprep.subr.bf16.mxu0 0
        %1045 = vmatpush2.bf16.msra.mxu0 0
        %1046 = vmatprep.subr.bf16.mxu0 0
        %1047 = vmatpush2.bf16.msra.mxu0 0
        %1048 = vmatprep.subr.bf16.mxu0 0
        %1049 = vmatpush2.bf16.msra.mxu0 0
        %1050 = vmatprep.subr.bf16.mxu0 0
        %1051 = vmatpush2.bf16.msra.mxu0 0
        %1052 = vmatprep.subr.bf16.mxu0 0
        %1053 = vmatpush2.bf16.msra.mxu0 0
        %1054 = vmatprep.subr.bf16.mxu0 0
        %1055 = vmatpush2.bf16.msra.mxu0 0
        %1056 = vmatprep.mubr.bf16.mxu0 0
        %1057 = vmatmul.mubr.bf16.gmra.mxu0 %v1019
        %v1058 = vpop.f32.mrf.mxu0
        %v1059 = vadd.f32 0.0, %v1058
        %v1060 = vpop.f32.mrf.mxu0
        %v1061 = vpop.f32.mrf.mxu0
        %v1062 = vpop.f32.mrf.mxu0
        %1063 = vdwg.mxu0
        %v1065 = vsel %vm687, %v919, 0
        %v1068 = vsel %vm928, %v686, 0
        %1070 = vmatprep.subr.bf16.mxu0 0
        %1071 = vmatpush1.bf16.msra.mxu0 0
        %1072 = vmatprep.subr.bf16.mxu0 0
        %1073 = vmatpush1.bf16.msra.mxu0 0
        %1074 = vmatprep.subr.bf16.mxu0 0
        %1075 = vmatpush1.bf16.msra.mxu0 0
        %1076 = vmatprep.subr.bf16.mxu0 0
        %1077 = vmatpush1.bf16.msra.mxu0 0
        %1078 = vmatprep.subr.bf16.mxu0 0
        %1079 = vmatpush1.bf16.msra.mxu0 0
        %1080 = vmatprep.subr.bf16.mxu0 0
        %1081 = vmatpush1.bf16.msra.mxu0 0
        %1082 = vmatprep.subr.bf16.mxu0 0
        %1083 = vmatpush1.bf16.msra.mxu0 0
        %1084 = vmatprep.subr.bf16.mxu0 0
        %1085 = vmatpush1.bf16.msra.mxu0 %v1068
        %1086 = vmatprep.subr.bf16.mxu0 0
        %1087 = vmatpush2.bf16.msra.mxu0 0
        %1088 = vmatprep.subr.bf16.mxu0 0
        %1089 = vmatpush2.bf16.msra.mxu0 0
        %1090 = vmatprep.subr.bf16.mxu0 0
        %1091 = vmatpush2.bf16.msra.mxu0 0
        %1092 = vmatprep.subr.bf16.mxu0 0
        %1093 = vmatpush2.bf16.msra.mxu0 0
        %1094 = vmatprep.subr.bf16.mxu0 0
        %1095 = vmatpush2.bf16.msra.mxu0 0
        %1096 = vmatprep.subr.bf16.mxu0 0
        %1097 = vmatpush2.bf16.msra.mxu0 0
        %1098 = vmatprep.subr.bf16.mxu0 0
        %1099 = vmatpush2.bf16.msra.mxu0 0
        %1100 = vmatprep.subr.bf16.mxu0 0
        %1101 = vmatpush2.bf16.msra.mxu0 0
        %1102 = vmatprep.mubr.bf16.mxu0 0
        %1103 = vmatmul.mubr.bf16.gmra.mxu0 %v1065
        %v1104 = vpop.f32.mrf.mxu0
        %v1105 = vadd.f32 0.0, %v1104
        %v1106 = vpop.f32.mrf.mxu0
        %v1107 = vpop.f32.mrf.mxu0
        %v1108 = vpop.f32.mrf.mxu0
        %1109 = vdwg.mxu0
        %v1110 = vpack.c.bf16 %v967, %v967
        %v1111 = vpack.c.bf16 %v1013, %v1013
        %v1112 = vpack.c.bf16 %v1059, %v1059
        %v1113 = vpack.c.bf16 %v1105, %v1105
        %1115 = vrot.lane.b32.xlu0 %v1111, 8
        %v1116 = vpop.permute.xlu0 %1115
        %1118 = vrot.lane.b32.xlu0 %v1112, 16
        %v1119 = vpop.permute.xlu0 %1118
        %1121 = vrot.lane.b32.xlu0 %v1113, 24
        %v1122 = vpop.permute.xlu0 %1121
        %v1125 = vsel %vm687, %v1110, %v1116
        %vm1126 = vcmask 130048
        %v1128 = vsel %vm1126, %v1125, %v1119
        %vm1129 = vcmask 195584
        %v1131 = vsel %vm1129, %v1128, %v1122
        %v1132 = vld [vmem:[#allocation5] sm:$0xf]
        %v1133 = vld [vmem:[#allocation5 + $0x4] sm:$0xf]
        %v1134 = vld [vmem:[#allocation5 + $0x8] sm:$0xf]
        %v1135 = vld [vmem:[#allocation5 + $0xc] sm:$0xf]
        %v1136 = vld [vmem:[%s5] sm:$0x1]
        %v1138 = vlaneseq
        %v1139 = vshrl.u32 %v1138, 7
        %v1140 = vsub.s32 0, %v1139
        %v1141 = vrot.slane %v1136, %v1140
        %v1147 = vunpack.c.l.b16 %v1132
        %v1148 = vunpack.c.l.b16 %v1133
        %v1149 = vunpack.c.l.b16 %v1134
        %v1150 = vunpack.c.l.b16 %v1135
        %v1151 = vpack.c.b16 %v1148, %v1147
        %v1152 = vpack.c.b16 %v1150, %v1149
        %vm1155 = vcmask 261120
        %v1156 = vsel %vm1155, %v1131, 0
        %1158 = vmatprep.subr.bf16.mxu0 0
        %1159 = vmatpush1.bf16.msra.mxu0 0
        %1160 = vmatprep.subr.bf16.mxu0 0
        %1161 = vmatpush1.bf16.msra.mxu0 0
        %1162 = vmatprep.subr.bf16.mxu0 0
        %1163 = vmatpush1.bf16.msra.mxu0 0
        %1164 = vmatprep.subr.bf16.mxu0 0
        %1165 = vmatpush1.bf16.msra.mxu0 0
        %1166 = vmatprep.subr.bf16.mxu0 0
        %1167 = vmatpush1.bf16.msra.mxu0 0
        %1168 = vmatprep.subr.bf16.mxu0 0
        %1169 = vmatpush1.bf16.msra.mxu0 0
        %1170 = vmatprep.subr.bf16.mxu0 0
        %1171 = vmatpush1.bf16.msra.mxu0 %v1152
        %1172 = vmatprep.subr.bf16.mxu0 0
        %1173 = vmatpush1.bf16.msra.mxu0 %v1151
        %1174 = vmatprep.subr.bf16.mxu0 0
        %1175 = vmatpush2.bf16.msra.mxu0 0
        %1176 = vmatprep.subr.bf16.mxu0 0
        %1177 = vmatpush2.bf16.msra.mxu0 0
        %1178 = vmatprep.subr.bf16.mxu0 0
        %1179 = vmatpush2.bf16.msra.mxu0 0
        %1180 = vmatprep.subr.bf16.mxu0 0
        %1181 = vmatpush2.bf16.msra.mxu0 0
        %1182 = vmatprep.subr.bf16.mxu0 0
        %1183 = vmatpush2.bf16.msra.mxu0 0
        %1184 = vmatprep.subr.bf16.mxu0 0
        %1185 = vmatpush2.bf16.msra.mxu0 0
        %1186 = vmatprep.subr.bf16.mxu0 0
        %1187 = vmatpush2.bf16.msra.mxu0 0
        %1188 = vmatprep.subr.bf16.mxu0 0
        %1189 = vmatpush2.bf16.msra.mxu0 0
        %1190 = vmatprep.mubr.bf16.mxu0 0
        %1191 = vmatmul.mubr.bf16.gmra.mxu0 %v1156
        %v1192 = vpop.f32.mrf.mxu0
        %v1193 = vadd.f32 %v1141, %v1192
        %v1194 = vpop.f32.mrf.mxu0
        %v1195 = vpop.f32.mrf.mxu0
        %v1196 = vpop.f32.mrf.mxu0
        %1197 = vdwg.mxu0
        %v1198 = vadd.f32 %v674, %v1193
        %v1199 = vsel %vm1155, %v1198, 0.0
        %1200 = vadd.xlane.f32.xlu0 %v1199
        %v1201 = vpop.xlane.xlu0 %1200
        %v1202 = vrcp.pop 32.0
        %v1203 = vmul.f32 %v1201, %v1202
        %v1204 = vsub.f32 %v1198, %v1203
        %v1205 = vmul.f32 %v1204, %v1204
        %v1206 = vsel %vm1155, %v1205, 0.0
        %1207 = vadd.xlane.f32.xlu0 %v1206
        %v1208 = vpop.xlane.xlu0 %1207
        %v1209 = vmul.f32 %v1208, %v1202
        %v1210 = vadd.f32 %v1209, 1e-05
        %v1211 = vrsqrt.pop %v1210
        %v1212 = vmul.f32 %v1204, %v1211
        %v1213 = vld [vmem:[%s6] sm:$0x1]
        %v1215 = vlaneseq
        %v1216 = vshrl.u32 %v1215, 7
        %v1217 = vsub.s32 0, %v1216
        %v1218 = vrot.slane %v1213, %v1217
        %v1220 = vmul.f32 %v1212, %v1218
        %v1221 = vld [vmem:[#allocation7] sm:$0x1]
        %v1223 = vlaneseq
        %v1224 = vshrl.u32 %v1223, 7
        %v1225 = vsub.s32 0, %v1224
        %v1226 = vrot.slane %v1221, %v1225
        %v1228 = vadd.f32 %v1220, %v1226
        %v1229 = vpack.c.bf16 %v1228, %v1228
        %v1230 = vld [vmem:[#allocation8] sm:$0xf]
        %v1231 = vld [vmem:[#allocation8 + $0x4] sm:$0xf]
        %v1232 = vld [vmem:[#allocation8 + $0x8] sm:$0xf]
        %v1233 = vld [vmem:[#allocation8 + $0xc] sm:$0xf]
        %v1234 = vld [vmem:[#allocation10] sm:$0x1]
        %v1236 = vlaneseq
        %v1237 = vshrl.u32 %v1236, 7
        %v1238 = vsub.s32 0, %v1237
        %v1239 = vrot.slane %v1234, %v1238
        %v1245 = vunpack.c.l.b16 %v1230
        %v1246 = vunpack.c.l.b16 %v1231
        %v1247 = vunpack.c.l.b16 %v1232
        %v1248 = vunpack.c.l.b16 %v1233
        %v1249 = vpack.c.b16 %v1246, %v1245
        %v1250 = vpack.c.b16 %v1248, %v1247
        %v1254 = vsel %vm1155, %v1229, 0
        %1256 = vmatprep.subr.bf16.mxu0 0
        %1257 = vmatpush1.bf16.msra.mxu0 0
        %1258 = vmatprep.subr.bf16.mxu0 0
        %1259 = vmatpush1.bf16.msra.mxu0 0
        %1260 = vmatprep.subr.bf16.mxu0 0
        %1261 = vmatpush1.bf16.msra.mxu0 0
        %1262 = vmatprep.subr.bf16.mxu0 0
        %1263 = vmatpush1.bf16.msra.mxu0 0
        %1264 = vmatprep.subr.bf16.mxu0 0
        %1265 = vmatpush1.bf16.msra.mxu0 0
        %1266 = vmatprep.subr.bf16.mxu0 0
        %1267 = vmatpush1.bf16.msra.mxu0 0
        %1268 = vmatprep.subr.bf16.mxu0 0
        %1269 = vmatpush1.bf16.msra.mxu0 %v1250
        %1270 = vmatprep.subr.bf16.mxu0 0
        %1271 = vmatpush1.bf16.msra.mxu0 %v1249
        %1272 = vmatprep.subr.bf16.mxu0 0
        %1273 = vmatpush2.bf16.msra.mxu0 0
        %1274 = vmatprep.subr.bf16.mxu0 0
        %1275 = vmatpush2.bf16.msra.mxu0 0
        %1276 = vmatprep.subr.bf16.mxu0 0
        %1277 = vmatpush2.bf16.msra.mxu0 0
        %1278 = vmatprep.subr.bf16.mxu0 0
        %1279 = vmatpush2.bf16.msra.mxu0 0
        %1280 = vmatprep.subr.bf16.mxu0 0
        %1281 = vmatpush2.bf16.msra.mxu0 0
        %1282 = vmatprep.subr.bf16.mxu0 0
        %1283 = vmatpush2.bf16.msra.mxu0 0
        %1284 = vmatprep.subr.bf16.mxu0 0
        %1285 = vmatpush2.bf16.msra.mxu0 0
        %1286 = vmatprep.subr.bf16.mxu0 0
        %1287 = vmatpush2.bf16.msra.mxu0 0
        %1288 = vmatprep.mubr.bf16.mxu0 0
        %1289 = vmatmul.mubr.bf16.gmra.mxu0 %v1254
        %v1290 = vpop.f32.mrf.mxu0
        %v1291 = vadd.f32 %v1239, %v1290
        %v1292 = vpop.f32.mrf.mxu0
        %v1293 = vpop.f32.mrf.mxu0
        %v1294 = vpop.f32.mrf.mxu0
        %1295 = vdwg.mxu0
        %v1296 = vmax.f32 %v1291, 0.0
        %v1297 = vpack.c.bf16 %v1296, %v1296
        %v1298 = vld [vmem:[%s10] sm:$0xf]
        %v1299 = vld [vmem:[%s10 + $0x4] sm:$0xf]
        %v1300 = vld [vmem:[%s10 + $0x8] sm:$0xf]
        %v1301 = vld [vmem:[%s10 + $0xc] sm:$0xf]
        %v1302 = vld [vmem:[%s10 + $0x10] sm:$0xf]
        %v1303 = vld [vmem:[%s10 + $0x14] sm:$0xf]
        %v1304 = vld [vmem:[%s10 + $0x18] sm:$0xf]
        %v1305 = vld [vmem:[%s10 + $0x1c] sm:$0xf]
        %v1306 = vld [vmem:[%s10 + $0x20] sm:$0xf]
        %v1307 = vld [vmem:[%s10 + $0x24] sm:$0xf]
        %v1308 = vld [vmem:[%s10 + $0x28] sm:$0xf]
        %v1309 = vld [vmem:[%s10 + $0x2c] sm:$0xf]
        %v1310 = vld [vmem:[%s10 + $0x30] sm:$0xf]
        %v1311 = vld [vmem:[%s10 + $0x34] sm:$0xf]
        %v1312 = vld [vmem:[%s10 + $0x38] sm:$0xf]
        %v1313 = vld [vmem:[%s10 + $0x3c] sm:$0xf]
        %v1314 = vld [vmem:[%s11] sm:$0x1]
        %v1316 = vlaneseq
        %v1317 = vshrl.u32 %v1316, 7
        %v1318 = vsub.s32 0, %v1317
        %v1319 = vrot.slane %v1314, %v1318
        %v1337 = vunpack.c.l.b16 %v1298
        %v1338 = vunpack.c.l.b16 %v1299
        %v1339 = vunpack.c.l.b16 %v1300
        %v1340 = vunpack.c.l.b16 %v1301
        %v1341 = vunpack.c.l.b16 %v1302
        %v1342 = vunpack.c.l.b16 %v1303
        %v1343 = vunpack.c.l.b16 %v1304
        %v1344 = vunpack.c.l.b16 %v1305
        %v1345 = vunpack.c.l.b16 %v1306
        %v1346 = vunpack.c.l.b16 %v1307
        %v1347 = vunpack.c.l.b16 %v1308
        %v1348 = vunpack.c.l.b16 %v1309
        %v1349 = vunpack.c.l.b16 %v1310
        %v1350 = vunpack.c.l.b16 %v1311
        %v1351 = vunpack.c.l.b16 %v1312
        %v1352 = vunpack.c.l.b16 %v1313
        %v1353 = vpack.c.b16 %v1338, %v1337
        %v1354 = vpack.c.b16 %v1340, %v1339
        %v1355 = vpack.c.b16 %v1342, %v1341
        %v1356 = vpack.c.b16 %v1344, %v1343
        %v1357 = vpack.c.b16 %v1346, %v1345
        %v1358 = vpack.c.b16 %v1348, %v1347
        %v1359 = vpack.c.b16 %v1350, %v1349
        %v1360 = vpack.c.b16 %v1352, %v1351
        %1369 = vmatprep.subr.bf16.mxu0 0
        %1370 = vmatpush1.bf16.msra.mxu0 %v1360
        %1371 = vmatprep.subr.bf16.mxu0 0
        %1372 = vmatpush1.bf16.msra.mxu0 %v1359
        %1373 = vmatprep.subr.bf16.mxu0 0
        %1374 = vmatpush1.bf16.msra.mxu0 %v1358
        %1375 = vmatprep.subr.bf16.mxu0 0
        %1376 = vmatpush1.bf16.msra.mxu0 %v1357
        %1377 = vmatprep.subr.bf16.mxu0 0
        %1378 = vmatpush1.bf16.msra.mxu0 %v1356
        %1379 = vmatprep.subr.bf16.mxu0 0
        %1380 = vmatpush1.bf16.msra.mxu0 %v1355
        %1381 = vmatprep.subr.bf16.mxu0 0
        %1382 = vmatpush1.bf16.msra.mxu0 %v1354
        %1383 = vmatprep.subr.bf16.mxu0 0
        %1384 = vmatpush1.bf16.msra.mxu0 %v1353
        %1385 = vmatprep.subr.bf16.mxu0 0
        %1386 = vmatpush2.bf16.msra.mxu0 0
        %1387 = vmatprep.subr.bf16.mxu0 0
        %1388 = vmatpush2.bf16.msra.mxu0 0
        %1389 = vmatprep.subr.bf16.mxu0 0
        %1390 = vmatpush2.bf16.msra.mxu0 0
        %1391 = vmatprep.subr.bf16.mxu0 0
        %1392 = vmatpush2.bf16.msra.mxu0 0
        %1393 = vmatprep.subr.bf16.mxu0 0
        %1394 = vmatpush2.bf16.msra.mxu0 0
        %1395 = vmatprep.subr.bf16.mxu0 0
        %1396 = vmatpush2.bf16.msra.mxu0 0
        %1397 = vmatprep.subr.bf16.mxu0 0
        %1398 = vmatpush2.bf16.msra.mxu0 0
        %1399 = vmatprep.subr.bf16.mxu0 0
        %1400 = vmatpush2.bf16.msra.mxu0 0
        %1401 = vmatprep.mubr.bf16.mxu0 0
        %1402 = vmatmul.mubr.bf16.gmra.mxu0 %v1297
        %v1403 = vpop.f32.mrf.mxu0
        %v1404 = vadd.f32 %v1319, %v1403
        %v1405 = vpop.f32.mrf.mxu0
        %v1406 = vpop.f32.mrf.mxu0
        %v1407 = vpop.f32.mrf.mxu0
        %1408 = vdwg.mxu0
        %v1409 = vadd.f32 %v1228, %v1404
        %v1410 = vsel %vm1155, %v1409, 0.0
        %1411 = vadd.xlane.f32.xlu0 %v1410
        %v1412 = vpop.xlane.xlu0 %1411
        %v1413 = vmul.f32 %v1412, %v1202
        %v1414 = vsub.f32 %v1409, %v1413
        %v1415 = vmul.f32 %v1414, %v1414
        %v1416 = vsel %vm1155, %v1415, 0.0
        %1417 = vadd.xlane.f32.xlu0 %v1416
        %v1418 = vpop.xlane.xlu0 %1417
        %v1419 = vmul.f32 %v1418, %v1202
        %v1420 = vadd.f32 %v1419, 1e-05
        %v1421 = vrsqrt.pop %v1420
        %v1422 = vmul.f32 %v1414, %v1421
        %v1423 = vld [vmem:[%s12] sm:$0x1]
        %v1425 = vlaneseq
        %v1426 = vshrl.u32 %v1425, 7
        %v1427 = vsub.s32 0, %v1426
        %v1428 = vrot.slane %v1423, %v1427
        %v1430 = vmul.f32 %v1422, %v1428
        %v1431 = vld [vmem:[%s13] sm:$0x1]
        %v1433 = vlaneseq
        %v1434 = vshrl.u32 %v1433, 7
        %v1435 = vsub.s32 0, %v1434
        %v1436 = vrot.slane %v1431, %v1435
        %v1438 = vadd.f32 %v1430, %v1436
        %1439 = vst.msk [vmem:[%s645] sm:$0xff] %vm1155, %v1438
        %s1440 = sand.u32 %s378, 1
        %s1441 = scalar_lea.sflag [#allocation4], %s1440
        %s1442 = sand.u32 %s378, 1
        %s1443 = smul.addr %s1442, 8
        %s1444 = scalar_lea.vmem [#allocation11], %s1443
        %s1445 = sand.u32 %s406, 1
        %s1446 = scalar_lea.sflag [#allocation13], %s1445
        %s1447 = sand.u32 %s406, 1
        %s1448 = smul.addr %s1447, 16
        %s1449 = scalar_lea.vmem [#allocation12], %s1448
        // Predicated region
        $region97: #{tpu_custom_call.1} parent=75 // pred_check
          %p1450 = pneg %p388
        $region98: #{tpu_custom_call.1} parent=75 // pred_check_branch
          %1452 = sbr.rel (%p1450) target = $region100
        $region99: #{tpu_custom_call.1} parent=75 // pred_region
          %s1454 = ssub.s32 128, 128
          %1455 = vsyncadd %s1441, %s1454
          %s1456 = sadd.s32 %s43, %s42
          %s1457 = smul.addr %s1456, 128
          %s1458 = scalar_lea.hbm %s14, %s1457
          %s1460 = sshll.u32 %s1444, 4
          %s1461 = int_to_ptr.vmem [resolvable:$true] %s1460
          %1463 = dma.vmem_to_hbm [thread:$0]  %s1461, 128, %s1458, %s1441
        $region100: #{tpu_custom_call.1} parent=75 // pred_fallthru
          _
        // Predicated region
        $region101: #{tpu_custom_call.1} parent=75 // pred_check
          %p1464 = pneg %p416
        $region102: #{tpu_custom_call.1} parent=75 // pred_check_branch
          %1466 = sbr.rel (%p1464) target = $region104
        $region103: #{tpu_custom_call.1} parent=75 // pred_region
          %s1468 = ssub.s32 256, 256
          %1469 = vsyncadd %s1446, %s1468
          %s1470 = smul.addr %s42, 4
          %s1471 = sadd.s32 %s43, %s1470
          %s1472 = smul.addr %s1471, 64
          %s1473 = scalar_lea.hbm %s15, %s1472
          %s1474 = sshll.u32 %s1449, 4
          %s1475 = int_to_ptr.vmem [resolvable:$true] %s1474
          %1480 = dma.vmem_to_hbm [thread:$0]  %s1475, 256, %s1473, %s1446, 64, 64, 4
        $region104: #{tpu_custom_call.1} parent=75 // pred_fallthru
          _
      $region76: #{tpu_custom_call.1} parent=5 // pred_fallthru
        _
      %p1481 = scmp.le.s32.totalorder 2, %s33
      // Predicated region
      $region105: #{tpu_custom_call.1} parent=5 // pred_check
        %p1482 = pneg %p1481
      $region106: #{tpu_custom_call.1} parent=5 // pred_check_branch
        %1484 = sbr.rel (%p1482) target = $region108
      $region107: #{tpu_custom_call.1} parent=5 // pred_region
        %s1485 = ssub.s32 %s33, 2
        // Predicated region
        $region109: #{tpu_custom_call.1} parent=107 // pred_check
          %p1486 = pneg %p394
        $region110: #{tpu_custom_call.1} parent=107 // pred_check_branch
          %1488 = sbr.rel (%p1486) target = $region112
        $region111: #{tpu_custom_call.1} parent=107 // pred_region
          %s1489 = sand.u32 %s379, 1
          %s1490 = scalar_lea.sflag [#allocation4], %s1489
          %s1491 = sand.u32 %s379, 1
          %s1492 = smul.addr %s1491, 8
          %s1493 = scalar_lea.vmem [#allocation11], %s1492
          %1494 = dma.done %s1490, 128
        $region112: #{tpu_custom_call.1} parent=107 // pred_fallthru
          _
        // Predicated region
        $region113: #{tpu_custom_call.1} parent=107 // pred_check
          %p1495 = pneg %p422
        $region114: #{tpu_custom_call.1} parent=107 // pred_check_branch
          %1497 = sbr.rel (%p1495) target = $region116
        $region115: #{tpu_custom_call.1} parent=107 // pred_region
          %s1498 = sand.u32 %s407, 1
          %s1499 = scalar_lea.sflag [#allocation13], %s1498
          %s1500 = sand.u32 %s407, 1
          %s1501 = smul.addr %s1500, 16
          %s1502 = scalar_lea.vmem [#allocation12], %s1501
          %1503 = dma.done %s1499, 256
        $region116: #{tpu_custom_call.1} parent=107 // pred_fallthru
          _
      $region108: #{tpu_custom_call.1} parent=5 // pred_fallthru
        _
    $region6: #{tpu_custom_call.1} parent=1 // loop_footer
      %s37 = sadd.s32 1, %s33
    $region7: #{tpu_custom_call.1} parent=1 // loop_footer_branch
      %32 = sbr.rel target = $region3
    $region8: #{tpu_custom_call.1} parent=1 // loop_exit
      _
    %1504 = vsyncpa [#allocation3], 1
    %s1505 = scalar_lea.sflag [#allocation3], 1
    %1506 = vsyncpa %s1505, 1
    %1507 = vsyncpa [#allocation6], 1
    %1508 = vsyncpa [#allocation9], 1
    %1509 = vsyncpa [#allocation4], 1
    %s1510 = scalar_lea.sflag [#allocation4], 1
    %1511 = vsyncpa %s1510, 1
    %1512 = vsyncpa [#allocation13], 1
    %s1513 = scalar_lea.sflag [#allocation13], 1
    %1514 = vsyncpa %s1513, 1

</llo_original>
